<compile_context>
chip_gen: v7x
topology: tpu7x:2x2x1
jax: 0.10.0
libtpu: 0.0.40
codegen_flags: <defaults>
</compile_context>

<pallas_src>
import jax
import jax.numpy as jnp
from jax.experimental import pallas as pl
from jax.experimental.pallas import tpu as pltpu


def _round_up(x, m):
    return ((x + m - 1) // m) * m


# ---------------------------------------------------------------------------
# Fused kernel: conv1(+b1 folded)+ReLU -> conv2 -> running max over points,
# then (last N tile) bias2+ReLU -> conv3+BN3+ReLU -> conv4.
# ---------------------------------------------------------------------------
def rot_red_kernel(x_ref, w1_ref, w2_ref, b2_ref, w3_ref, b3_ref, w4_ref, b4_ref,
                   out_ref, max_ref):
    kv = pl.program_id(1)

    @pl.when(kv == 0)
    def _init():
        max_ref[...] = jnp.full(max_ref.shape, -jnp.inf, max_ref.dtype)

    b_t, f, n_t = x_ref.shape

    # NCW tile -> packed points. A ones row is appended along the channel axis
    # so the folded conv1 bias rides in the matmul (K = f+1); the transpose to
    # channels-last happens here (XLU), not in the wrapper.
    x = x_ref[...]                                             # (b_t, f, n_t) f32
    ones = jnp.ones((b_t, 1, n_t), x.dtype)
    xa = jnp.concatenate([x, ones], axis=1)                    # (b_t, f+1, n_t)
    xa = jnp.transpose(xa, (0, 2, 1))                          # (b_t, n_t, f+1)
    xa = xa.reshape(b_t * n_t, f + 1).astype(jnp.bfloat16)     # MXU M = b_t*n_t

    # conv1(+BN1+b1 folded) -> ReLU -> conv2, chunked over the 1024 channels so
    # only a (M, 256) intermediate is live at a time.
    c1 = w1_ref.shape[1]
    c2 = w2_ref.shape[1]
    chunk = 256 if c1 % 256 == 0 else c1
    h2 = jnp.zeros((b_t * n_t, c2), jnp.float32)
    for c0 in range(0, c1, chunk):
        h1c = jnp.dot(xa, w1_ref[:, c0:c0 + chunk],
                      preferred_element_type=jnp.float32)
        h1c = jnp.maximum(h1c, 0.0).astype(w2_ref.dtype)       # relu + bf16 cast
        h2 = h2 + jnp.dot(h1c, w2_ref[c0:c0 + chunk, :],
                          preferred_element_type=jnp.float32)

    # Running max over the point axis. conv2's bias+ReLU are deferred to the
    # head: max_n relu(h + b) == relu(max_n h + b) (per-channel b, relu monotone).
    tile_max = jnp.max(h2.reshape(b_t, n_t, c2), axis=1)       # (b_t, 256)
    max_ref[...] = jnp.maximum(max_ref[...], tile_max)

    # Fused head on the last N tile, computed on the resident max accumulator.
    @pl.when(kv == pl.num_programs(1) - 1)
    def _head():
        pooled = jnp.maximum(max_ref[...] + b2_ref[...], 0.0)  # (b_t, 256)
        h3 = jnp.dot(pooled, w3_ref[...], preferred_element_type=jnp.float32)
        h3 = jnp.maximum(h3 + b3_ref[...], 0.0)
        # TODO(synk): dropout(p=0.2) is identity in eval mode; training-mode
        #             masking (pltpu.prng_random_bits + scaled keep) not done.
        out = jnp.dot(h3, w4_ref[...], preferred_element_type=jnp.float32)
        out_ref[...] = (out + b4_ref[...]).reshape(out_ref.shape)


# ---------------------------------------------------------------------------
# Tiling / hardware-aware parameters
# ---------------------------------------------------------------------------
_VMEM_BYTES_CACHE = [None]


def _vmem_capacity_bytes():
    if _VMEM_BYTES_CACHE[0] is None:
        cap = 64 * 1024 * 1024        # conservative default (v7x per-core VMEM)
        try:
            info = pltpu.get_tpu_info()
            for name in ("vmem_capacity_bytes", "vmem_size_bytes", "vmem_bytes"):
                v = getattr(info, name, None)
                if v:
                    cap = int(v)
                    break
        except Exception:
            pass
        _VMEM_BYTES_CACHE[0] = cap
    return _VMEM_BYTES_CACHE[0]


def _choose_tiles(B, N):
    big_vmem = _vmem_capacity_bytes() >= 96 * 1024 * 1024      # v5e / v6e: 128 MiB
    n_cap = 4096 if big_vmem else 2048                         # v7x: 64 MiB / core

    # Balanced N tiling: minimal edge-replication waste, lane-aligned tiles.
    if N <= n_cap:
        n_t, n_tiles = N, 1
    else:
        n_tiles = pl.cdiv(N, n_cap)
        n_t = _round_up(pl.cdiv(N, n_tiles), 128)
    N_pad = n_t * n_tiles

    # Pack batch rows so the MXU M dim (b_t*n_t) reaches ~512 on small point
    # clouds, but keep >= 2 batch tiles when B >= 2 so the "parallel" axis can
    # split across v7x's two TensorCores.
    b_t = min(B, max(1, pl.cdiv(512, n_t)))
    if B >= 2:
        b_t = max(1, min(b_t, B // 2))
    # TODO(synk): for B == 1 on v7x the second TensorCore stays idle; splitting
    #             the N reduction into two parallel partial maxes would fix it.
    B_pad = _round_up(B, b_t)

    vmem_limit = (64 if big_vmem else 32) * 1024 * 1024
    return b_t, n_t, B_pad, N_pad, vmem_limit


@jax.jit
def rot_red_forward(x_ncw, params):
    """x_ncw: (B, f, N) float32, PyTorch NCW layout."""
    (w1, b1), (w2, b2), (w3, b3), (w4, b4) = params
    B, f, N = x_ncw.shape
    c1 = w1.shape[1]          # 1024
    c2 = w2.shape[1]          # 256
    c3 = w3.shape[1]          # 256
    k = w4.shape[1]

    b_t, n_t, B_pad, N_pad, vmem_limit = _choose_tiles(B, N)

    x = x_ncw
    if N_pad != N:
        # Edge-replicate points: the max over N is invariant under duplication.
        x = jnp.pad(x, ((0, 0), (0, 0), (0, N_pad - N)), mode="edge")
    if B_pad != B:
        x = jnp.pad(x, ((0, B_pad - B), (0, 0), (0, 0)))

    # Fold b1 into w1 as an extra input row (bias rides the MXU); bf16 operands.
    w1_aug = jnp.concatenate([w1, b1], axis=0).astype(jnp.bfloat16)   # (f+1, 1024)
    w2b = w2.astype(jnp.bfloat16)

    # Lane-dense head output: pad k up to 128 and slice back afterwards.
    k_pad = _round_up(k, 128)
    w4p = jnp.zeros((c3, k_pad), jnp.float32).at[:, :k].set(w4)
    b4p = jnp.zeros((1, k_pad), jnp.float32).at[:, :k].set(b4)

    out_pad = pl.pallas_call(
        rot_red_kernel,
        out_shape=jax.ShapeDtypeStruct((B_pad, 1, k_pad), jnp.float32),
        grid_spec=pltpu.PrefetchScalarGridSpec(
            num_scalar_prefetch=0,
            grid=(B_pad // b_t, N_pad // n_t),
            in_specs=[
                pl.BlockSpec((b_t, f, n_t), lambda ib, kv: (ib, 0, kv)),   # x (NCW)
                pl.BlockSpec((f + 1, c1), lambda ib, kv: (0, 0)),          # w1+b1
                pl.BlockSpec((c1, c2), lambda ib, kv: (0, 0)),             # w2
                pl.BlockSpec((1, c2), lambda ib, kv: (0, 0)),              # b2
                pl.BlockSpec((c2, c3), lambda ib, kv: (0, 0)),             # w3
                pl.BlockSpec((1, c3), lambda ib, kv: (0, 0)),              # b3
                pl.BlockSpec((c3, k_pad), lambda ib, kv: (0, 0)),          # w4 (padded)
                pl.BlockSpec((1, k_pad), lambda ib, kv: (0, 0)),           # b4 (padded)
            ],
            out_specs=pl.BlockSpec((b_t, 1, k_pad), lambda ib, kv: (ib, 0, 0)),
            scratch_shapes=[pltpu.VMEM((b_t, c2), jnp.float32)],           # running max
        ),
        compiler_params=pltpu.CompilerParams(
            dimension_semantics=("parallel", "arbitrary"),
            vmem_limit_bytes=vmem_limit,
        ),
    )(x, w1_aug, w2b, b2, w3, b3, w4p, b4p)

    return out_pad[:B, 0, :k]


# ---------------------------------------------------------------------------
# Parameter construction (BN folded into the preceding 1x1 conv) and reference
# ---------------------------------------------------------------------------
def _fold_bn(w_oc_ic, bias_oc, gamma, beta, mean, var, eps=1e-5):
    """Fold eval-mode BatchNorm1d into a 1x1 conv. Returns (C_in, C_out) W, (1, C_out) b."""
    scale = gamma / jnp.sqrt(var + eps)                              # (C_out,)
    w_folded = w_oc_ic * scale[:, None]                              # (C_out, C_in)
    b_folded = scale * (bias_oc - mean) + beta                       # (C_out,)
    return jnp.transpose(w_folded), b_folded[None, :]


def make_params(key, f, k):
    """Deterministic synthetic parameters with the shapes Rot_red.__init__ implies."""
    ks = jax.random.split(key, 16)

    def conv_params(kw, kb, c_out, c_in):
        w = jax.random.normal(kw, (c_out, c_in), jnp.float32) * (1.0 / jnp.sqrt(c_in))
        b = jax.random.normal(kb, (c_out,), jnp.float32) * 0.01
        return w, b

    def bn_params(kg, kb, km, kv, c):
        gamma = 1.0 + 0.1 * jax.random.normal(kg, (c,), jnp.float32)
        beta = 0.1 * jax.random.normal(kb, (c,), jnp.float32)
        mean = 0.1 * jax.random.normal(km, (c,), jnp.float32)
        var = jnp.abs(jax.random.normal(kv, (c,), jnp.float32)) + 0.5
        return gamma, beta, mean, var

    w1, b1 = conv_params(ks[0], ks[1], 1024, f)
    w2, b2 = conv_params(ks[2], ks[3], 256, 1024)
    w3, b3 = conv_params(ks[4], ks[5], 256, 256)
    w4, b4 = conv_params(ks[6], ks[7], k, 256)

    bn1 = bn_params(ks[8], ks[9], ks[10], ks[11], 1024)
    bn2 = bn_params(ks[12], ks[13], ks[14], ks[15], 256)
    bn3 = bn_params(*jax.random.split(jax.random.fold_in(key, 99), 4), 256)

    p1 = _fold_bn(w1, b1, *bn1)
    p2 = _fold_bn(w2, b2, *bn2)
    p3 = _fold_bn(w3, b3, *bn3)
    p4 = (jnp.transpose(w4), b4[None, :])
    return (p1, p2, p3, p4)


def reference_forward(x_ncw, params):
    """Pure-JAX reference with the same dtype policy as the kernel
    (bf16 conv1/conv2 operands, bf16-rounded folded b1, f32 accumulation, f32 head)."""
    (w1, b1), (w2, b2), (w3, b3), (w4, b4) = params
    x = jnp.transpose(x_ncw, (0, 2, 1)).astype(jnp.bfloat16)         # (B, N, f)
    b1_q = b1.astype(jnp.bfloat16).astype(jnp.float32)               # mirrors bias fold
    h1 = jnp.einsum("bnf,fo->bno", x, w1.astype(jnp.bfloat16),
                    preferred_element_type=jnp.float32) + b1_q
    h1 = jnp.maximum(h1, 0.0).astype(jnp.bfloat16)
    h2 = jnp.einsum("bno,oc->bnc", h1, w2.astype(jnp.bfloat16),
                    preferred_element_type=jnp.float32) + b2
    h2 = jnp.maximum(h2, 0.0)
    m = jnp.max(h2, axis=1)                                          # (B, 256)
    h3 = jnp.maximum(
        jnp.dot(m, w3, precision=jax.lax.Precision.HIGHEST) + b3, 0.0)
    out = jnp.dot(h3, w4, precision=jax.lax.Precision.HIGHEST) + b4  # (B, k)
    return out


if __name__ == "__main__":
    # Small shapes: FLAGS.feat_c_R -> 32, FLAGS.R_c -> 6, batch=2, points=16.
    B, f, N, k = 2, 32, 16, 6

    key = jax.random.PRNGKey(0)
    kx, kp = jax.random.split(key)
    x = jax.random.normal(kx, (B, f, N), jnp.float32)                # PyTorch NCW input
    params = make_params(kp, f, k)

    out = rot_red_forward(x, params)
    out = jax.block_until_ready(out)

    ref = reference_forward(x, params)
    assert out.shape == (B, k), out.shape
    assert jnp.allclose(out, ref, atol=2e-3, rtol=2e-3), (out, ref)

    print("KERNEL_OK")
</pallas_src>

<mosaic_0001>
module attributes {stable_mosaic.version = 11 : i64} {
  func.func @rot_red_kernel(%arg0: i32, %arg1: i32, %arg2: memref<1x32x16xf32, #tpu.memory_space<vmem>>, %arg3: memref<33x1024xbf16, #tpu.memory_space<vmem>>, %arg4: memref<1024x256xbf16, #tpu.memory_space<vmem>>, %arg5: memref<1x256xf32, #tpu.memory_space<vmem>>, %arg6: memref<256x256xf32, #tpu.memory_space<vmem>>, %arg7: memref<1x256xf32, #tpu.memory_space<vmem>>, %arg8: memref<256x128xf32, #tpu.memory_space<vmem>>, %arg9: memref<1x128xf32, #tpu.memory_space<vmem>>, %arg10: memref<1x1x128xf32, #tpu.memory_space<vmem>>, %arg11: memref<1x256xf32, #tpu.memory_space<vmem>>) attributes {dimension_semantics = [#tpu.dimension_semantics<parallel>, #tpu.dimension_semantics<arbitrary>], iteration_bounds = array<i64: 2, 1>, scalar_prefetch = 0 : i64, scratch_operands = 1 : i64, tpu.core_type = #tpu.core_type<tc>, window_params = [{transform_indices = @transform_0, window_bounds = array<i64: 1, 32, 16>}, {pipeline_mode = #tpu.pipeline_mode<synchronous>, transform_indices = @transform_1, window_bounds = array<i64: 33, 1024>}, {pipeline_mode = #tpu.pipeline_mode<synchronous>, transform_indices = @transform_2, window_bounds = array<i64: 1024, 256>}, {pipeline_mode = #tpu.pipeline_mode<synchronous>, transform_indices = @transform_3, window_bounds = array<i64: 1, 256>}, {pipeline_mode = #tpu.pipeline_mode<synchronous>, transform_indices = @transform_4, window_bounds = array<i64: 256, 256>}, {pipeline_mode = #tpu.pipeline_mode<synchronous>, transform_indices = @transform_5, window_bounds = array<i64: 1, 256>}, {pipeline_mode = #tpu.pipeline_mode<synchronous>, transform_indices = @transform_6, window_bounds = array<i64: 256, 128>}, {pipeline_mode = #tpu.pipeline_mode<synchronous>, transform_indices = @transform_7, window_bounds = array<i64: 1, 128>}, {transform_indices = @transform_8, window_bounds = array<i64: 1, 1, 128>}]} {
    %c0_i32 = arith.constant 0 : i32
    %0 = arith.cmpi eq, %arg1, %c0_i32 : i32
    %1 = arith.extui %0 : i1 to i32
    %c0_i32_0 = arith.constant 0 : i32
    %2 = arith.cmpi ne, %1, %c0_i32_0 : i32
    scf.if %2 {
      %cst_36 = arith.constant 0xFF800000 : f32
      %50 = vector.broadcast %cst_36 : f32 to vector<1x256xf32>
      %c0_37 = arith.constant 0 : index
      %c0_38 = arith.constant 0 : index
      %51 = vector.load %arg11[%c0_37, %c0_38] : memref<1x256xf32, #tpu.memory_space<vmem>>, vector<1x256xf32>
      tpu.vector_store %arg11[%c0_37, %c0_38], %50 {strides = array<i32>} : memref<1x256xf32, #tpu.memory_space<vmem>>, vector<1x256xf32>,
    } else {
    }
    %c0 = arith.constant 0 : index
    %c0_1 = arith.constant 0 : index
    %c0_2 = arith.constant 0 : index
    %3 = vector.load %arg2[%c0, %c0_1, %c0_2] : memref<1x32x16xf32, #tpu.memory_space<vmem>>, vector<1x32x16xf32>
    %cst = arith.constant 1.000000e+00 : f32
    %4 = vector.broadcast %cst : f32 to vector<1x1x16xf32>
    %5 = tpu.concatenate %3, %4 in 1 : vector<1x32x16xf32>, vector<1x1x16xf32> -> vector<1x33x16xf32>
    %6 = tpu.transpose %5, [0, 2, 1] : vector<1x33x16xf32> -> vector<1x16x33xf32>
    %7 = vector.shape_cast %6 : vector<1x16x33xf32> to vector<16x33xf32>
    %8 = arith.truncf %7 : vector<16x33xf32> to vector<16x33xbf16>
    %cst_3 = arith.constant 0.000000e+00 : f32
    %9 = vector.broadcast %cst_3 : f32 to vector<16x256xf32>
    %c0_4 = arith.constant 0 : index
    %c0_5 = arith.constant 0 : index
    %10 = vector.load %arg3[%c0_4, %c0_5] : memref<33x1024xbf16, #tpu.memory_space<vmem>>, vector<33x256xbf16>
    %cst_6 = arith.constant dense<0.000000e+00> : vector<16x256xf32>
    %11 = tpu.matmul %8, %10, %cst_6 {dimension_numbers = #tpu.dot_dimension_numbers<[1], [0], [0], [1], [0, 0, 1, 1], [], []>} : vector<16x33xbf16>, vector<33x256xbf16>, vector<16x256xf32> -> vector<16x256xf32>
    %cst_7 = arith.constant 0.000000e+00 : f32
    %12 = vector.broadcast %cst_7 : f32 to vector<16x256xf32>
    %13 = arith.maximumf %11, %12 : vector<16x256xf32>
    %14 = arith.truncf %13 : vector<16x256xf32> to vector<16x256xbf16>
    %c0_8 = arith.constant 0 : index
    %c0_9 = arith.constant 0 : index
    %15 = vector.load %arg4[%c0_8, %c0_9] : memref<1024x256xbf16, #tpu.memory_space<vmem>>, vector<256x256xbf16>
    %cst_10 = arith.constant dense<0.000000e+00> : vector<16x256xf32>
    %16 = tpu.matmul %14, %15, %cst_10 {dimension_numbers = #tpu.dot_dimension_numbers<[1], [0], [0], [1], [0, 0, 1, 1], [], []>} : vector<16x256xbf16>, vector<256x256xbf16>, vector<16x256xf32> -> vector<16x256xf32>
    %17 = arith.addf %9, %16 : vector<16x256xf32>
    %c0_11 = arith.constant 0 : index
    %c256 = arith.constant 256 : index
    %18 = vector.load %arg3[%c0_11, %c256] : memref<33x1024xbf16, #tpu.memory_space<vmem>>, vector<33x256xbf16>
    %cst_12 = arith.constant dense<0.000000e+00> : vector<16x256xf32>
    %19 = tpu.matmul %8, %18, %cst_12 {dimension_numbers = #tpu.dot_dimension_numbers<[1], [0], [0], [1], [0, 0, 1, 1], [], []>} : vector<16x33xbf16>, vector<33x256xbf16>, vector<16x256xf32> -> vector<16x256xf32>
    %cst_13 = arith.constant 0.000000e+00 : f32
    %20 = vector.broadcast %cst_13 : f32 to vector<16x256xf32>
    %21 = arith.maximumf %19, %20 : vector<16x256xf32>
    %22 = arith.truncf %21 : vector<16x256xf32> to vector<16x256xbf16>
    %c256_14 = arith.constant 256 : index
    %c0_15 = arith.constant 0 : index
    %23 = vector.load %arg4[%c256_14, %c0_15] : memref<1024x256xbf16, #tpu.memory_space<vmem>>, vector<256x256xbf16>
    %cst_16 = arith.constant dense<0.000000e+00> : vector<16x256xf32>
    %24 = tpu.matmul %22, %23, %cst_16 {dimension_numbers = #tpu.dot_dimension_numbers<[1], [0], [0], [1], [0, 0, 1, 1], [], []>} : vector<16x256xbf16>, vector<256x256xbf16>, vector<16x256xf32> -> vector<16x256xf32>
    %25 = arith.addf %17, %24 : vector<16x256xf32>
    %c0_17 = arith.constant 0 : index
    %c512 = arith.constant 512 : index
    %26 = vector.load %arg3[%c0_17, %c512] : memref<33x1024xbf16, #tpu.memory_space<vmem>>, vector<33x256xbf16>
    %cst_18 = arith.constant dense<0.000000e+00> : vector<16x256xf32>
    %27 = tpu.matmul %8, %26, %cst_18 {dimension_numbers = #tpu.dot_dimension_numbers<[1], [0], [0], [1], [0, 0, 1, 1], [], []>} : vector<16x33xbf16>, vector<33x256xbf16>, vector<16x256xf32> -> vector<16x256xf32>
    %cst_19 = arith.constant 0.000000e+00 : f32
    %28 = vector.broadcast %cst_19 : f32 to vector<16x256xf32>
    %29 = arith.maximumf %27, %28 : vector<16x256xf32>
    %30 = arith.truncf %29 : vector<16x256xf32> to vector<16x256xbf16>
    %c512_20 = arith.constant 512 : index
    %c0_21 = arith.constant 0 : index
    %31 = vector.load %arg4[%c512_20, %c0_21] : memref<1024x256xbf16, #tpu.memory_space<vmem>>, vector<256x256xbf16>
    %cst_22 = arith.constant dense<0.000000e+00> : vector<16x256xf32>
    %32 = tpu.matmul %30, %31, %cst_22 {dimension_numbers = #tpu.dot_dimension_numbers<[1], [0], [0], [1], [0, 0, 1, 1], [], []>} : vector<16x256xbf16>, vector<256x256xbf16>, vector<16x256xf32> -> vector<16x256xf32>
    %33 = arith.addf %25, %32 : vector<16x256xf32>
    %c0_23 = arith.constant 0 : index
    %c768 = arith.constant 768 : index
    %34 = vector.load %arg3[%c0_23, %c768] : memref<33x1024xbf16, #tpu.memory_space<vmem>>, vector<33x256xbf16>
    %cst_24 = arith.constant dense<0.000000e+00> : vector<16x256xf32>
    %35 = tpu.matmul %8, %34, %cst_24 {dimension_numbers = #tpu.dot_dimension_numbers<[1], [0], [0], [1], [0, 0, 1, 1], [], []>} : vector<16x33xbf16>, vector<33x256xbf16>, vector<16x256xf32> -> vector<16x256xf32>
    %cst_25 = arith.constant 0.000000e+00 : f32
    %36 = vector.broadcast %cst_25 : f32 to vector<16x256xf32>
    %37 = arith.maximumf %35, %36 : vector<16x256xf32>
    %38 = arith.truncf %37 : vector<16x256xf32> to vector<16x256xbf16>
    %c768_26 = arith.constant 768 : index
    %c0_27 = arith.constant 0 : index
    %39 = vector.load %arg4[%c768_26, %c0_27] : memref<1024x256xbf16, #tpu.memory_space<vmem>>, vector<256x256xbf16>
    %cst_28 = arith.constant dense<0.000000e+00> : vector<16x256xf32>
    %40 = tpu.matmul %38, %39, %cst_28 {dimension_numbers = #tpu.dot_dimension_numbers<[1], [0], [0], [1], [0, 0, 1, 1], [], []>} : vector<16x256xbf16>, vector<256x256xbf16>, vector<16x256xf32> -> vector<16x256xf32>
    %41 = arith.addf %33, %40 : vector<16x256xf32>
    %42 = vector.shape_cast %41 : vector<16x256xf32> to vector<1x16x256xf32>
    %cst_29 = arith.constant dense<0xFF800000> : vector<1x256xf32>
    %43 = vector.multi_reduction <maximumf>, %42, %cst_29 [1] : vector<1x16x256xf32> to vector<1x256xf32>
    %c0_30 = arith.constant 0 : index
    %c0_31 = arith.constant 0 : index
    %44 = vector.load %arg11[%c0_30, %c0_31] : memref<1x256xf32, #tpu.memory_space<vmem>>, vector<1x256xf32>
    %45 = arith.maximumf %44, %43 : vector<1x256xf32>
    %c0_32 = arith.constant 0 : index
    %c0_33 = arith.constant 0 : index
    %46 = vector.load %arg11[%c0_32, %c0_33] : memref<1x256xf32, #tpu.memory_space<vmem>>, vector<1x256xf32>
    tpu.vector_store %arg11[%c0_32, %c0_33], %45 {strides = array<i32>} : memref<1x256xf32, #tpu.memory_space<vmem>>, vector<1x256xf32>,
    %c0_i32_34 = arith.constant 0 : i32
    %47 = arith.cmpi eq, %arg1, %c0_i32_34 : i32
    %48 = arith.extui %47 : i1 to i32
    %c0_i32_35 = arith.constant 0 : i32
    %49 = arith.cmpi ne, %48, %c0_i32_35 : i32
    scf.if %49 {
      %c0_36 = arith.constant 0 : index
      %c0_37 = arith.constant 0 : index
      %50 = vector.load %arg11[%c0_36, %c0_37] : memref<1x256xf32, #tpu.memory_space<vmem>>, vector<1x256xf32>
      %c0_38 = arith.constant 0 : index
      %c0_39 = arith.constant 0 : index
      %51 = vector.load %arg5[%c0_38, %c0_39] : memref<1x256xf32, #tpu.memory_space<vmem>>, vector<1x256xf32>
      %52 = arith.addf %50, %51 : vector<1x256xf32>
      %cst_40 = arith.constant 0.000000e+00 : f32
      %53 = vector.broadcast %cst_40 : f32 to vector<1x256xf32>
      %54 = arith.maximumf %52, %53 : vector<1x256xf32>
      %c0_41 = arith.constant 0 : index
      %c0_42 = arith.constant 0 : index
      %55 = vector.load %arg6[%c0_41, %c0_42] : memref<256x256xf32, #tpu.memory_space<vmem>>, vector<256x256xf32>
      %cst_43 = arith.constant dense<0.000000e+00> : vector<1x256xf32>
      %56 = tpu.matmul %54, %55, %cst_43 {dimension_numbers = #tpu.dot_dimension_numbers<[1], [0], [0], [1], [0, 0, 1, 1], [], []>} : vector<1x256xf32>, vector<256x256xf32>, vector<1x256xf32> -> vector<1x256xf32>
      %c0_44 = arith.constant 0 : index
      %c0_45 = arith.constant 0 : index
      %57 = vector.load %arg7[%c0_44, %c0_45] : memref<1x256xf32, #tpu.memory_space<vmem>>, vector<1x256xf32>
      %58 = arith.addf %56, %57 : vector<1x256xf32>
      %cst_46 = arith.constant 0.000000e+00 : f32
      %59 = vector.broadcast %cst_46 : f32 to vector<1x256xf32>
      %60 = arith.maximumf %58, %59 : vector<1x256xf32>
      %c0_47 = arith.constant 0 : index
      %c0_48 = arith.constant 0 : index
      %61 = vector.load %arg8[%c0_47, %c0_48] : memref<256x128xf32, #tpu.memory_space<vmem>>, vector<256x128xf32>
      %cst_49 = arith.constant dense<0.000000e+00> : vector<1x128xf32>
      %62 = tpu.matmul %60, %61, %cst_49 {dimension_numbers = #tpu.dot_dimension_numbers<[1], [0], [0], [1], [0, 0, 1, 1], [], []>} : vector<1x256xf32>, vector<256x128xf32>, vector<1x128xf32> -> vector<1x128xf32>
      %c0_50 = arith.constant 0 : index
      %c0_51 = arith.constant 0 : index
      %63 = vector.load %arg9[%c0_50, %c0_51] : memref<1x128xf32, #tpu.memory_space<vmem>>, vector<1x128xf32>
      %64 = arith.addf %62, %63 : vector<1x128xf32>
      %65 = vector.shape_cast %64 : vector<1x128xf32> to vector<1x1x128xf32>
      %c0_52 = arith.constant 0 : index
      %c0_53 = arith.constant 0 : index
      %c0_54 = arith.constant 0 : index
      %66 = vector.load %arg10[%c0_52, %c0_53, %c0_54] : memref<1x1x128xf32, #tpu.memory_space<vmem>>, vector<1x1x128xf32>
      tpu.vector_store %arg10[%c0_52, %c0_53, %c0_54], %65 {strides = array<i32>} : memref<1x1x128xf32, #tpu.memory_space<vmem>>, vector<1x1x128xf32>,
    } else {
    }
    return
  }
  func.func @transform_0(%arg0: i32, %arg1: i32) -> (i32, i32, i32) {
    %c0_i32 = arith.constant 0 : i32
    %c0_i32_0 = arith.constant 0 : i32
    return %arg0, %c0_i32, %arg1 : i32, i32, i32
  }
  func.func @transform_1(%arg0: i32, %arg1: i32) -> (i32, i32) {
    %c0_i32 = arith.constant 0 : i32
    %c0_i32_0 = arith.constant 0 : i32
    %c0_i32_1 = arith.constant 0 : i32
    return %c0_i32, %c0_i32_0 : i32, i32
  }
  func.func @transform_2(%arg0: i32, %arg1: i32) -> (i32, i32) {
    %c0_i32 = arith.constant 0 : i32
    %c0_i32_0 = arith.constant 0 : i32
    %c0_i32_1 = arith.constant 0 : i32
    return %c0_i32, %c0_i32_0 : i32, i32
  }
  func.func @transform_3(%arg0: i32, %arg1: i32) -> (i32, i32) {
    %c0_i32 = arith.constant 0 : i32
    %c0_i32_0 = arith.constant 0 : i32
    %c0_i32_1 = arith.constant 0 : i32
    return %c0_i32, %c0_i32_0 : i32, i32
  }
  func.func @transform_4(%arg0: i32, %arg1: i32) -> (i32, i32) {
    %c0_i32 = arith.constant 0 : i32
    %c0_i32_0 = arith.constant 0 : i32
    %c0_i32_1 = arith.constant 0 : i32
    return %c0_i32, %c0_i32_0 : i32, i32
  }
  func.func @transform_5(%arg0: i32, %arg1: i32) -> (i32, i32) {
    %c0_i32 = arith.constant 0 : i32
    %c0_i32_0 = arith.constant 0 : i32
    %c0_i32_1 = arith.constant 0 : i32
    return %c0_i32, %c0_i32_0 : i32, i32
  }
  func.func @transform_6(%arg0: i32, %arg1: i32) -> (i32, i32) {
    %c0_i32 = arith.constant 0 : i32
    %c0_i32_0 = arith.constant 0 : i32
    %c0_i32_1 = arith.constant 0 : i32
    return %c0_i32, %c0_i32_0 : i32, i32
  }
  func.func @transform_7(%arg0: i32, %arg1: i32) -> (i32, i32) {
    %c0_i32 = arith.constant 0 : i32
    %c0_i32_0 = arith.constant 0 : i32
    %c0_i32_1 = arith.constant 0 : i32
    return %c0_i32, %c0_i32_0 : i32, i32
  }
  func.func @transform_8(%arg0: i32, %arg1: i32) -> (i32, i32, i32) {
    %c0_i32 = arith.constant 0 : i32
    %c0_i32_0 = arith.constant 0 : i32
    %c0_i32_1 = arith.constant 0 : i32
    return %arg0, %c0_i32, %c0_i32_0 : i32, i32, i32
  }
}

</mosaic_0001>

<llo_original>
// kernel: rot_red_forward.1
$region0: #{rot_red_forward.1}
  #allocation0 [shape = 'u32[]', space=smem, size = 0x4, offset = 0x4, fixed_abs, tag = 'smem constant byte address 0x4 - core index']
  #allocation1 [shape = 'u32[144,128]{1,0:T(1,128)}', space=vmem, size = 0x12000, scoped, tag = 'internal scratch']
  #allocation2 [shape = 'f32[1,256]{1,0:T(1,128)}', space=vmem, size = 0x400, scoped, tag = 'scratch operand']
  %s0 = inlined_call_operand.vmem [shape: f32[2,32,16], index: 0, kind: input, shape index: {}]
  %s1 = inlined_call_operand.vmem [shape: bf16[33,1024], index: 1, kind: input, shape index: {}]
  %s2 = inlined_call_operand.vmem [shape: bf16[1024,256], index: 2, kind: input, shape index: {}]
  %s3 = inlined_call_operand.vmem [shape: f32[1,256], index: 3, kind: input, shape index: {}]
  %s4 = inlined_call_operand.vmem [shape: f32[256,256], index: 4, kind: input, shape index: {}]
  %s5 = inlined_call_operand.vmem [shape: f32[1,256], index: 5, kind: input, shape index: {}]
  %s6 = inlined_call_operand.vmem [shape: f32[256,128], index: 6, kind: input, shape index: {}]
  %s7 = inlined_call_operand.vmem [shape: f32[1,128], index: 7, kind: input, shape index: {}]
  %s8 = inlined_call_operand.hbm [shape: f32[2,1,128], index: 8, kind: output, shape index: {}]
  %s9 = sld [smem:[#allocation0]]
  $region73: #{rot_red_forward.1} parent=0
    _
  %s11 = ssub.s32 1, %s9
  %s12 = scalar_select 0, %s11, %s9
  $region1: #{rot_red_forward.1} parent=0
    #allocation3 [shape = 'u8[1024]{0}', space=vmem, size = 0x400, scoped, tag = 'output window, operand 0']
    #allocation4 [shape = 's32[2]{0}', space=sflag, size = 0x8, scoped, tag = 'scoped memory for rot_red_forward.1']
    %13 = vsyncpa [#allocation4], 0
    %s14 = scalar_lea.sflag [#allocation4], 1
    %15 = vsyncpa %s14, 0
    loop: start=0, step=1, limit=4
    $region2: #{rot_red_forward.1} parent=1 // loop_pre_header
      _
    $region3: #{rot_red_forward.1} parent=1 // loop_header
      %s17 = sphi 0, %s21
      %p18 = scmp.ge.s32.totalorder %s17, 4
      %s24 = sphi 0, %s36
      %s25 = sphi 0, %s32
      %s26 = sphi 0, %s24
      %s27 = sphi 0, %s25
      %s28 = sphi 0, %s26
      %s29 = sphi 0, %s27
      %s41 = sphi 0, %s43
      %s44 = sphi 0, %s41
      %s45 = sphi 0, %s44
      %s61 = sphi 0, %s45
      %s65 = sphi 0, %s65
      %s67 = sphi 0, %s65
      %s68 = sphi 0, %s67
      %s82 = sphi 0, %s68
      %s86 = sphi 0, %s86
      %s88 = sphi 0, %s86
      %s89 = sphi 0, %s88
      %s103 = sphi 0, %s89
      %s107 = sphi 0, %s107
      %s109 = sphi 0, %s107
      %s110 = sphi 0, %s109
      %s124 = sphi 0, %s110
      %s128 = sphi 0, %s128
      %s130 = sphi 0, %s128
      %s131 = sphi 0, %s130
      %s145 = sphi 0, %s131
      %s149 = sphi 0, %s149
      %s151 = sphi 0, %s149
      %s152 = sphi 0, %s151
      %s166 = sphi 0, %s152
      %s170 = sphi 0, %s170
      %s172 = sphi 0, %s170
      %s173 = sphi 0, %s172
      %s187 = sphi 0, %s173
      %s191 = sphi 0, %s191
      %s193 = sphi 0, %s191
      %s194 = sphi 0, %s193
      %s208 = sphi 0, %s194
      %s214 = sphi 0, %s216
      %s217 = sphi 0, %s214
      %s218 = sphi 0, %s217
      %s234 = sphi 0, %s218
    $region4: #{rot_red_forward.1} parent=1 // loop_header_branch
      %20 = sbr.rel (%p18) target = $region8
    $region5: #{rot_red_forward.1} parent=1 // loop_body
      %s22 = ssub.s32 %s17, 1
      %s23 = ssub.s32 %s17, 2
      %s30 = sadd.s32 1, %s25
      %p31 = scmp.ge.s32.totalorder %s30, 1
      %s32 = scalar_select %p31, 0, %s30
      %s33 = sadd.s32 1, %s24
      %s34 = scalar_select %p31, %s33, %s24
      %p35 = scmp.ge.s32.totalorder %s34, 2
      %s36 = scalar_select %p35, 0, %s34
      %s37 = ssub.s32 %s24, %s36
      %s38 = ssub.s32 %s25, %s32
      %s39 = sor.u32 %s37, %s38
      %p40 = scmp.eq.s32.totalorder %s39, 0
      %s42 = sadd.s32 %s41, 1
      %s43 = scalar_select %p40, %s41, %s42
      %p46 = pneg %p40
      %p47 = scmp.eq.s32.totalorder %s17, 1
      %p48 = por %p46, %p47
      %p49 = scmp.ne.s32.totalorder %s41, %s44
      %p50 = scmp.eq.s32.totalorder %s17, 0
      %p51 = por %p49, %p50
      %p52 = scmp.ne.s32.totalorder %s41, %s44
      %p53 = scmp.eq.s32.totalorder %s22, 1
      %p54 = por %p52, %p53
      %p55 = scmp.ne.s32.totalorder %s44, %s45
      %p56 = scmp.eq.s32.totalorder %s22, 0
      %p57 = por %p55, %p56
      %p58 = scmp.ne.s32.totalorder %s44, %s45
      %p59 = scmp.eq.s32.totalorder %s23, 1
      %p60 = por %p58, %p59
      %p62 = scmp.ne.s32.totalorder %s45, %s61
      %p63 = scmp.eq.s32.totalorder %s23, 0
      %p64 = por %p62, %p63
      %s66 = sadd.s32 %s65, 1
      %p69 = scmp.eq.s32.totalorder %s17, 1
      %p70 = scmp.ne.s32.totalorder %s65, %s67
      %p71 = scmp.eq.s32.totalorder %s17, 0
      %p72 = por %p70, %p71
      %p73 = scmp.ne.s32.totalorder %s65, %s67
      %p74 = scmp.eq.s32.totalorder %s22, 1
      %p75 = por %p73, %p74
      %p76 = scmp.ne.s32.totalorder %s67, %s68
      %p77 = scmp.eq.s32.totalorder %s22, 0
      %p78 = por %p76, %p77
      %p79 = scmp.ne.s32.totalorder %s67, %s68
      %p80 = scmp.eq.s32.totalorder %s23, 1
      %p81 = por %p79, %p80
      %p83 = scmp.ne.s32.totalorder %s68, %s82
      %p84 = scmp.eq.s32.totalorder %s23, 0
      %p85 = por %p83, %p84
      %s87 = sadd.s32 %s86, 1
      %p90 = scmp.eq.s32.totalorder %s17, 1
      %p91 = scmp.ne.s32.totalorder %s86, %s88
      %p92 = scmp.eq.s32.totalorder %s17, 0
      %p93 = por %p91, %p92
      %p94 = scmp.ne.s32.totalorder %s86, %s88
      %p95 = scmp.eq.s32.totalorder %s22, 1
      %p96 = por %p94, %p95
      %p97 = scmp.ne.s32.totalorder %s88, %s89
      %p98 = scmp.eq.s32.totalorder %s22, 0
      %p99 = por %p97, %p98
      %p100 = scmp.ne.s32.totalorder %s88, %s89
      %p101 = scmp.eq.s32.totalorder %s23, 1
      %p102 = por %p100, %p101
      %p104 = scmp.ne.s32.totalorder %s89, %s103
      %p105 = scmp.eq.s32.totalorder %s23, 0
      %p106 = por %p104, %p105
      %s108 = sadd.s32 %s107, 1
      %p111 = scmp.eq.s32.totalorder %s17, 1
      %p112 = scmp.ne.s32.totalorder %s107, %s109
      %p113 = scmp.eq.s32.totalorder %s17, 0
      %p114 = por %p112, %p113
      %p115 = scmp.ne.s32.totalorder %s107, %s109
      %p116 = scmp.eq.s32.totalorder %s22, 1
      %p117 = por %p115, %p116
      %p118 = scmp.ne.s32.totalorder %s109, %s110
      %p119 = scmp.eq.s32.totalorder %s22, 0
      %p120 = por %p118, %p119
      %p121 = scmp.ne.s32.totalorder %s109, %s110
      %p122 = scmp.eq.s32.totalorder %s23, 1
      %p123 = por %p121, %p122
      %p125 = scmp.ne.s32.totalorder %s110, %s124
      %p126 = scmp.eq.s32.totalorder %s23, 0
      %p127 = por %p125, %p126
      %s129 = sadd.s32 %s128, 1
      %p132 = scmp.eq.s32.totalorder %s17, 1
      %p133 = scmp.ne.s32.totalorder %s128, %s130
      %p134 = scmp.eq.s32.totalorder %s17, 0
      %p135 = por %p133, %p134
      %p136 = scmp.ne.s32.totalorder %s128, %s130
      %p137 = scmp.eq.s32.totalorder %s22, 1
      %p138 = por %p136, %p137
      %p139 = scmp.ne.s32.totalorder %s130, %s131
      %p140 = scmp.eq.s32.totalorder %s22, 0
      %p141 = por %p139, %p140
      %p142 = scmp.ne.s32.totalorder %s130, %s131
      %p143 = scmp.eq.s32.totalorder %s23, 1
      %p144 = por %p142, %p143
      %p146 = scmp.ne.s32.totalorder %s131, %s145
      %p147 = scmp.eq.s32.totalorder %s23, 0
      %p148 = por %p146, %p147
      %s150 = sadd.s32 %s149, 1
      %p153 = scmp.eq.s32.totalorder %s17, 1
      %p154 = scmp.ne.s32.totalorder %s149, %s151
      %p155 = scmp.eq.s32.totalorder %s17, 0
      %p156 = por %p154, %p155
      %p157 = scmp.ne.s32.totalorder %s149, %s151
      %p158 = scmp.eq.s32.totalorder %s22, 1
      %p159 = por %p157, %p158
      %p160 = scmp.ne.s32.totalorder %s151, %s152
      %p161 = scmp.eq.s32.totalorder %s22, 0
      %p162 = por %p160, %p161
      %p163 = scmp.ne.s32.totalorder %s151, %s152
      %p164 = scmp.eq.s32.totalorder %s23, 1
      %p165 = por %p163, %p164
      %p167 = scmp.ne.s32.totalorder %s152, %s166
      %p168 = scmp.eq.s32.totalorder %s23, 0
      %p169 = por %p167, %p168
      %s171 = sadd.s32 %s170, 1
      %p174 = scmp.eq.s32.totalorder %s17, 1
      %p175 = scmp.ne.s32.totalorder %s170, %s172
      %p176 = scmp.eq.s32.totalorder %s17, 0
      %p177 = por %p175, %p176
      %p178 = scmp.ne.s32.totalorder %s170, %s172
      %p179 = scmp.eq.s32.totalorder %s22, 1
      %p180 = por %p178, %p179
      %p181 = scmp.ne.s32.totalorder %s172, %s173
      %p182 = scmp.eq.s32.totalorder %s22, 0
      %p183 = por %p181, %p182
      %p184 = scmp.ne.s32.totalorder %s172, %s173
      %p185 = scmp.eq.s32.totalorder %s23, 1
      %p186 = por %p184, %p185
      %p188 = scmp.ne.s32.totalorder %s173, %s187
      %p189 = scmp.eq.s32.totalorder %s23, 0
      %p190 = por %p188, %p189
      %s192 = sadd.s32 %s191, 1
      %p195 = scmp.eq.s32.totalorder %s17, 1
      %p196 = scmp.ne.s32.totalorder %s191, %s193
      %p197 = scmp.eq.s32.totalorder %s17, 0
      %p198 = por %p196, %p197
      %p199 = scmp.ne.s32.totalorder %s191, %s193
      %p200 = scmp.eq.s32.totalorder %s22, 1
      %p201 = por %p199, %p200
      %p202 = scmp.ne.s32.totalorder %s193, %s194
      %p203 = scmp.eq.s32.totalorder %s22, 0
      %p204 = por %p202, %p203
      %p205 = scmp.ne.s32.totalorder %s193, %s194
      %p206 = scmp.eq.s32.totalorder %s23, 1
      %p207 = por %p205, %p206
      %p209 = scmp.ne.s32.totalorder %s194, %s208
      %p210 = scmp.eq.s32.totalorder %s23, 0
      %p211 = por %p209, %p210
      %s212 = ssub.s32 %s24, %s36
      %p213 = scmp.eq.s32.totalorder %s212, 0
      %s215 = sadd.s32 %s214, 1
      %s216 = scalar_select %p213, %s214, %s215
      %p219 = pneg %p213
      %p220 = scmp.eq.s32.totalorder %s17, 1
      %p221 = por %p219, %p220
      %p222 = scmp.ne.s32.totalorder %s214, %s217
      %p223 = scmp.eq.s32.totalorder %s17, 0
      %p224 = por %p222, %p223
      %p225 = scmp.ne.s32.totalorder %s214, %s217
      %p226 = scmp.eq.s32.totalorder %s22, 1
      %p227 = por %p225, %p226
      %p228 = scmp.ne.s32.totalorder %s217, %s218
      %p229 = scmp.eq.s32.totalorder %s22, 0
      %p230 = por %p228, %p229
      %p231 = scmp.ne.s32.totalorder %s217, %s218
      %p232 = scmp.eq.s32.totalorder %s23, 1
      %p233 = por %p231, %p232
      %p235 = scmp.ne.s32.totalorder %s218, %s234
      %p236 = scmp.eq.s32.totalorder %s23, 0
      %p237 = por %p235, %p236
      %p238 = scmp.le.s32.totalorder 1, %s17
      %p239 = scmp.lt.s32.totalorder %s17, 3
      %p240 = pnand %p238, %p239
      %p241 = pneg %p240
      // Predicated region
      $region9: #{rot_red_forward.1} parent=5 // pred_check
        _
      $region10: #{rot_red_forward.1} parent=5 // pred_check_branch
        %243 = sbr.rel (%p240) target = $region12
      $region11: #{rot_red_forward.1} parent=5 // pred_region
        %s244 = ssub.s32 %s17, 1
        // Predicated region
        $region13: #{rot_red_forward.1} parent=11 // pred_check
          %p245 = pneg %p78
        $region14: #{rot_red_forward.1} parent=11 // pred_check_branch
          %247 = sbr.rel (%p245) target = $region16
        $region15: #{rot_red_forward.1} parent=11 // pred_region
          _
        $region16: #{rot_red_forward.1} parent=11 // pred_fallthru
          _
        // Predicated region
        $region17: #{rot_red_forward.1} parent=11 // pred_check
          %p248 = pneg %p99
        $region18: #{rot_red_forward.1} parent=11 // pred_check_branch
          %250 = sbr.rel (%p248) target = $region20
        $region19: #{rot_red_forward.1} parent=11 // pred_region
          _
        $region20: #{rot_red_forward.1} parent=11 // pred_fallthru
          _
        // Predicated region
        $region21: #{rot_red_forward.1} parent=11 // pred_check
          %p251 = pneg %p120
        $region22: #{rot_red_forward.1} parent=11 // pred_check_branch
          %253 = sbr.rel (%p251) target = $region24
        $region23: #{rot_red_forward.1} parent=11 // pred_region
          _
        $region24: #{rot_red_forward.1} parent=11 // pred_fallthru
          _
        // Predicated region
        $region25: #{rot_red_forward.1} parent=11 // pred_check
          %p254 = pneg %p141
        $region26: #{rot_red_forward.1} parent=11 // pred_check_branch
          %256 = sbr.rel (%p254) target = $region28
        $region27: #{rot_red_forward.1} parent=11 // pred_region
          _
        $region28: #{rot_red_forward.1} parent=11 // pred_fallthru
          _
        // Predicated region
        $region29: #{rot_red_forward.1} parent=11 // pred_check
          %p257 = pneg %p162
        $region30: #{rot_red_forward.1} parent=11 // pred_check_branch
          %259 = sbr.rel (%p257) target = $region32
        $region31: #{rot_red_forward.1} parent=11 // pred_region
          _
        $region32: #{rot_red_forward.1} parent=11 // pred_fallthru
          _
        // Predicated region
        $region33: #{rot_red_forward.1} parent=11 // pred_check
          %p260 = pneg %p183
        $region34: #{rot_red_forward.1} parent=11 // pred_check_branch
          %262 = sbr.rel (%p260) target = $region36
        $region35: #{rot_red_forward.1} parent=11 // pred_region
          _
        $region36: #{rot_red_forward.1} parent=11 // pred_fallthru
          _
        // Predicated region
        $region37: #{rot_red_forward.1} parent=11 // pred_check
          %p263 = pneg %p204
        $region38: #{rot_red_forward.1} parent=11 // pred_check_branch
          %265 = sbr.rel (%p263) target = $region40
        $region39: #{rot_red_forward.1} parent=11 // pred_region
          _
        $region40: #{rot_red_forward.1} parent=11 // pred_fallthru
          _
      $region12: #{rot_red_forward.1} parent=5 // pred_fallthru
        _
      %p266 = scmp.lt.s32.totalorder %s17, 2
      // Predicated region
      $region41: #{rot_red_forward.1} parent=5 // pred_check
        %p267 = pneg %p266
      $region42: #{rot_red_forward.1} parent=5 // pred_check_branch
        %269 = sbr.rel (%p267) target = $region44
      $region43: #{rot_red_forward.1} parent=5 // pred_region
        // Predicated region
        $region45: #{rot_red_forward.1} parent=43 // pred_check
          %p270 = pneg %p51
        $region46: #{rot_red_forward.1} parent=43 // pred_check_branch
          %272 = sbr.rel (%p270) target = $region48
        $region47: #{rot_red_forward.1} parent=43 // pred_region
          %p273 = scmp.lt.s32.totalorder %s24, 1
          %s274 = scalar_select %p273, %s24, 1
          %p275 = scmp.lt.s32.totalorder %s25, 0
          %s276 = scalar_select %p275, %s25, 0
          %s277 = smul.addr %s274, 4
          %s278 = sadd.s32 %s276, %s277
          %s279 = smul.addr %s278, 8
          %s280 = scalar_lea.vmem %s0, %s279
        $region48: #{rot_red_forward.1} parent=43 // pred_fallthru
          _
      $region44: #{rot_red_forward.1} parent=5 // pred_fallthru
        _
      %p281 = scmp.le.s32.totalorder 1, %s17
      %p282 = scmp.lt.s32.totalorder %s17, 3
      %p283 = pnand %p281, %p282
      %p284 = pneg %p283
      // Predicated region
      $region49: #{rot_red_forward.1} parent=5 // pred_check
        _
      $region50: #{rot_red_forward.1} parent=5 // pred_check_branch
        %286 = sbr.rel (%p283) target = $region52
      $region51: #{rot_red_forward.1} parent=5 // pred_region
        %s287 = ssub.s32 %s17, 1
        %p288 = scmp.lt.s32.totalorder %s26, 1
        %s289 = scalar_select %p288, %s26, 1
        %p290 = scmp.lt.s32.totalorder %s27, 0
        %s291 = scalar_select %p290, %s27, 0
        %s292 = smul.addr %s289, 4
        %s293 = sadd.s32 %s291, %s292
        %s294 = smul.addr %s293, 8
        %s295 = scalar_lea.vmem %s0, %s294
        %p296 = pneg %p57
        %p297 = pneg %p54
        %p298 = pneg %p78
        %p299 = pneg %p75
        %p300 = pneg %p99
        %p301 = pneg %p96
        %p302 = pneg %p120
        %p303 = pneg %p117
        %p304 = pneg %p141
        %p305 = pneg %p138
        %p306 = pneg %p162
        %p307 = pneg %p159
        %p308 = pneg %p183
        %p309 = pneg %p180
        %p310 = pneg %p204
        %p311 = pneg %p201
        %p312 = pneg %p230
        %p313 = pneg %p227
        %s314 = sand.u32 %s217, 1
        %s315 = scalar_lea.sflag [#allocation4], %s314
        %s316 = sand.u32 %s217, 1
        %s317 = scalar_lea.vmem [#allocation3], %s316
        %p318 = scmp.lt.s32.totalorder %s26, 1
        %s319 = scalar_select %p318, %s26, 1
        %p320 = scmp.lt.s32.totalorder %s27, 0
        %s321 = scalar_select %p320, %s27, 0
        %s322 = smul.addr %s319, 4
        %s323 = sadd.s32 %s321, %s322
        %s324 = smul.addr %s323, 8
        %s325 = scalar_lea.vmem %s0, %s324
        %p327 = scmp.eq.s32.totalorder %s27, 0
        // Predicated region
        $region53: #{rot_red_forward.1} parent=51 // pred_check
          %p328 = pneg %p327
        $region54: #{rot_red_forward.1} parent=51 // pred_check_branch
          %330 = sbr.rel (%p328) target = $region56
        $region55: #{rot_red_forward.1} parent=51 // pred_region
          %v331 = vlaneseq
          %vm332 = vcmp.ge.s32.totalorder %v331, 0
          %vm333 = vcmp.lt.s32.totalorder %v331, 256
          %vm334 = vmand %vm332, %vm333
          %335 = vst.msk [vmem:[#allocation2] sm:$0x3] %vm334, -inf
        $region56: #{rot_red_forward.1} parent=51 // pred_fallthru
          _
        %v336 = vld [vmem:[%s325] sm:$0xff]
        %v337 = vld [vmem:[%s325 + $0x8] sm:$0xff]
        %v338 = vld [vmem:[%s325 + $0x10] sm:$0xff]
        %v339 = vld [vmem:[%s325 + $0x18] sm:$0xff]
        %340 = vxpose.xlu0.b32.start [1/16] %v336, 128
        %341 = vxpose.xlu0.b32.cont [2/16] %v337, 128
        %342 = vxpose.xlu0.b32.cont [3/16] %v338, 128
        %343 = vxpose.xlu0.b32.cont [4/16] %v339, 128
        %344 = vxpose.xlu0.b32.cont [5/16] 1.0, 128
        %345 = vxpose.xlu0.b32.cont [6/16] 0.0, 128
        %346 = vxpose.xlu0.b32.cont [7/16] 0.0, 128
        %347 = vxpose.xlu0.b32.cont [8/16] 0.0, 128
        %348 = vxpose.xlu0.b32.cont [9/16] 0.0, 128
        %349 = vxpose.xlu0.b32.cont [10/16] 0.0, 128
        %350 = vxpose.xlu0.b32.cont [11/16] 0.0, 128
        %351 = vxpose.xlu0.b32.cont [12/16] 0.0, 128
        %352 = vxpose.xlu0.b32.cont [13/16] 0.0, 128
        %353 = vxpose.xlu0.b32.cont [14/16] 0.0, 128
        %354 = vxpose.xlu0.b32.cont [15/16] 0.0, 128
        %355 = vxpose.xlu0.b32.end [16/16] 0.0, 128
        %v356 = vpop.trf.xlu0
        %v357 = vpop.trf.xlu0
        %v358 = vpop.trf.xlu0
        %v359 = vpop.trf.xlu0
        %v360 = vpop.trf.xlu0
        %v361 = vpop.trf.xlu0
        %v362 = vpop.trf.xlu0
        %v363 = vpop.trf.xlu0
        %v364 = vpop.trf.xlu0
        %v365 = vpop.trf.xlu0
        %v366 = vpop.trf.xlu0
        %v367 = vpop.trf.xlu0
        %v368 = vpop.trf.xlu0
        %v369 = vpop.trf.xlu0
        %v370 = vpop.trf.xlu0
        %v371 = vpop.trf.xlu0
        %v372 = vpack.c.bf16 %v357, %v356
        %v373 = vld [vmem:[%s1] sm:$0xff]
        %v374 = vld [vmem:[%s1 + $0x20] sm:$0xff]
        %v375 = vld [vmem:[%s1 + $0x40] sm:$0xff]
        %v376 = vld [vmem:[%s1 + $0x60] sm:$0xff]
        %v377 = vld [vmem:[%s1 + $0x80] sm:$0x11]
        %v383 = vunpack.c.l.b16 %v373
        %v384 = vunpack.c.h.b16 %v373
        %v385 = vunpack.c.l.b16 %v374
        %v386 = vunpack.c.h.b16 %v374
        %v387 = vunpack.c.l.b16 %v375
        %v388 = vunpack.c.h.b16 %v375
        %v389 = vunpack.c.l.b16 %v376
        %v390 = vunpack.c.h.b16 %v376
        %v391 = vunpack.c.l.b16 %v377
        %v392 = vunpack.c.h.b16 %v377
        %v393 = vpack.c.b16 %v385, %v383
        %v394 = vpack.c.b16 %v386, %v384
        %v395 = vpack.c.b16 %v389, %v387
        %v396 = vpack.c.b16 %v390, %v388
        %v397 = vpack.c.b16 %v391, %v391
        %v398 = vpack.c.b16 %v392, %v392
        %vm403 = vcmask 269312
        %v405 = vsel %vm403, %v372, 0
        %vm407 = vcmask 1040384
        %v408 = vsel 0, 4294967295, 65535
        %v409 = vsel %vm407, %v408, 0
        %v411 = vand.u32 %v397, %v409
        %v414 = vand.u32 %v398, %v409
        %416 = vmatprep.subr.bf16.mxu0 %v394
        %417 = vmatpush1.bf16.msra.mxu0 %v393
        %418 = vmatprep.subr.bf16.mxu0 %v396
        %419 = vmatpush1.bf16.msra.mxu0 %v395
        %420 = vmatprep.subr.bf16.mxu0 %v414
        %421 = vmatpush1.bf16.msra.mxu0 %v411
        %422 = vmatprep.subr.bf16.mxu0 0
        %423 = vmatpush1.bf16.msra.mxu0 0
        %424 = vmatprep.subr.bf16.mxu0 0
        %425 = vmatpush1.bf16.msra.mxu0 0
        %426 = vmatprep.subr.bf16.mxu0 0
        %427 = vmatpush1.bf16.msra.mxu0 0
        %428 = vmatprep.subr.bf16.mxu0 0
        %429 = vmatpush1.bf16.msra.mxu0 0
        %430 = vmatprep.subr.bf16.mxu0 0
        %431 = vmatpush1.bf16.msra.mxu0 0
        %432 = vmatprep.subr.bf16.mxu0 0
        %433 = vmatpush1.bf16.msra.mxu0 0
        %434 = vmatprep.subr.bf16.mxu0 0
        %435 = vmatpush1.bf16.msra.mxu0 0
        %436 = vmatprep.subr.bf16.mxu0 0
        %437 = vmatpush1.bf16.msra.mxu0 0
        %438 = vmatprep.subr.bf16.mxu0 0
        %439 = vmatpush1.bf16.msra.mxu0 0
        %440 = vmatprep.subr.bf16.mxu0 0
        %441 = vmatpush1.bf16.msra.mxu0 0
        %442 = vmatprep.subr.bf16.mxu0 0
        %443 = vmatpush1.bf16.msra.mxu0 0
        %444 = vmatprep.subr.bf16.mxu0 0
        %445 = vmatpush1.bf16.msra.mxu0 0
        %446 = vmatprep.subr.bf16.mxu0 0
        %447 = vmatpush1.bf16.msra.mxu0 0
        %448 = vmatprep.mubr.bf16.mxu0 0
        %449 = vmatmul.mubr.bf16.gmra.mrb[0].mxu0 %v405
        %v450 = vpop.f32.mrb[0].mxu0
        %v451 = vadd.f32 0.0, %v450
        %v452 = vpop.f32.mrb[0].mxu0
        %v453 = vadd.f32 0.0, %v452
        %v454 = vpop.f32.mrb[0].mxu0
        %v455 = vadd.f32 0.0, %v454
        %v456 = vpop.f32.mrb[0].mxu0
        %v457 = vadd.f32 0.0, %v456
        %458 = vdwg.mxu0
        %v459 = vmax.f32 %v451, 0.0
        %v460 = vmax.f32 %v453, 0.0
        %v461 = vmax.f32 %v455, 0.0
        %v462 = vmax.f32 %v457, 0.0
        %v463 = vpack.c.bf16 %v461, %v459
        %v464 = vpack.c.bf16 %v462, %v460
        %v465 = vld [vmem:[%s2] sm:$0xff]
        %v466 = vld [vmem:[%s2 + $0x8] sm:$0xff]
        %v467 = vld [vmem:[%s2 + $0x10] sm:$0xff]
        %v468 = vld [vmem:[%s2 + $0x18] sm:$0xff]
        %v469 = vld [vmem:[%s2 + $0x20] sm:$0xff]
        %v470 = vld [vmem:[%s2 + $0x28] sm:$0xff]
        %v471 = vld [vmem:[%s2 + $0x30] sm:$0xff]
        %v472 = vld [vmem:[%s2 + $0x38] sm:$0xff]
        %v473 = vld [vmem:[%s2 + $0x40] sm:$0xff]
        %v474 = vld [vmem:[%s2 + $0x48] sm:$0xff]
        %v475 = vld [vmem:[%s2 + $0x50] sm:$0xff]
        %v476 = vld [vmem:[%s2 + $0x58] sm:$0xff]
        %v477 = vld [vmem:[%s2 + $0x60] sm:$0xff]
        %v478 = vld [vmem:[%s2 + $0x68] sm:$0xff]
        %v479 = vld [vmem:[%s2 + $0x70] sm:$0xff]
        %v480 = vld [vmem:[%s2 + $0x78] sm:$0xff]
        %v481 = vld [vmem:[%s2 + $0x80] sm:$0xff]
        %v482 = vld [vmem:[%s2 + $0x88] sm:$0xff]
        %v483 = vld [vmem:[%s2 + $0x90] sm:$0xff]
        %v484 = vld [vmem:[%s2 + $0x98] sm:$0xff]
        %v485 = vld [vmem:[%s2 + $0xa0] sm:$0xff]
        %v486 = vld [vmem:[%s2 + $0xa8] sm:$0xff]
        %v487 = vld [vmem:[%s2 + $0xb0] sm:$0xff]
        %v488 = vld [vmem:[%s2 + $0xb8] sm:$0xff]
        %v489 = vld [vmem:[%s2 + $0xc0] sm:$0xff]
        %v490 = vld [vmem:[%s2 + $0xc8] sm:$0xff]
        %v491 = vld [vmem:[%s2 + $0xd0] sm:$0xff]
        %v492 = vld [vmem:[%s2 + $0xd8] sm:$0xff]
        %v493 = vld [vmem:[%s2 + $0xe0] sm:$0xff]
        %v494 = vld [vmem:[%s2 + $0xe8] sm:$0xff]
        %v495 = vld [vmem:[%s2 + $0xf0] sm:$0xff]
        %v496 = vld [vmem:[%s2 + $0xf8] sm:$0xff]
        %v497 = vld [vmem:[%s1 + $0x8] sm:$0xff]
        %v498 = vld [vmem:[%s1 + $0x28] sm:$0xff]
        %v499 = vld [vmem:[%s1 + $0x48] sm:$0xff]
        %v500 = vld [vmem:[%s1 + $0x68] sm:$0xff]
        %v501 = vld [vmem:[%s1 + $0x88] sm:$0x11]
        %v507 = vunpack.c.l.b16 %v497
        %v508 = vunpack.c.h.b16 %v497
        %v509 = vunpack.c.l.b16 %v498
        %v510 = vunpack.c.h.b16 %v498
        %v511 = vunpack.c.l.b16 %v499
        %v512 = vunpack.c.h.b16 %v499
        %v513 = vunpack.c.l.b16 %v500
        %v514 = vunpack.c.h.b16 %v500
        %v515 = vunpack.c.l.b16 %v501
        %v516 = vunpack.c.h.b16 %v501
        %v517 = vpack.c.b16 %v509, %v507
        %v518 = vpack.c.b16 %v510, %v508
        %v519 = vpack.c.b16 %v513, %v511
        %v520 = vpack.c.b16 %v514, %v512
        %v521 = vpack.c.b16 %v515, %v515
        %v522 = vpack.c.b16 %v516, %v516
        %v528 = vand.u32 %v521, %v409
        %v531 = vand.u32 %v522, %v409
        %533 = vmatprep.subr.bf16.mxu0 %v518
        %534 = vmatpush1.bf16.msra.mxu0 %v517
        %535 = vmatprep.subr.bf16.mxu0 %v520
        %536 = vmatpush1.bf16.msra.mxu0 %v519
        %537 = vmatprep.subr.bf16.mxu0 %v531
        %538 = vmatpush1.bf16.msra.mxu0 %v528
        %539 = vmatprep.subr.bf16.mxu0 0
        %540 = vmatpush1.bf16.msra.mxu0 0
        %541 = vmatprep.subr.bf16.mxu0 0
        %542 = vmatpush1.bf16.msra.mxu0 0
        %543 = vmatprep.subr.bf16.mxu0 0
        %544 = vmatpush1.bf16.msra.mxu0 0
        %545 = vmatprep.subr.bf16.mxu0 0
        %546 = vmatpush1.bf16.msra.mxu0 0
        %547 = vmatprep.subr.bf16.mxu0 0
        %548 = vmatpush1.bf16.msra.mxu0 0
        %549 = vmatprep.subr.bf16.mxu0 0
        %550 = vmatpush1.bf16.msra.mxu0 0
        %551 = vmatprep.subr.bf16.mxu0 0
        %552 = vmatpush1.bf16.msra.mxu0 0
        %553 = vmatprep.subr.bf16.mxu0 0
        %554 = vmatpush1.bf16.msra.mxu0 0
        %555 = vmatprep.subr.bf16.mxu0 0
        %556 = vmatpush1.bf16.msra.mxu0 0
        %557 = vmatprep.subr.bf16.mxu0 0
        %558 = vmatpush1.bf16.msra.mxu0 0
        %559 = vmatprep.subr.bf16.mxu0 0
        %560 = vmatpush1.bf16.msra.mxu0 0
        %561 = vmatprep.subr.bf16.mxu0 0
        %562 = vmatpush1.bf16.msra.mxu0 0
        %563 = vmatprep.subr.bf16.mxu0 0
        %564 = vmatpush1.bf16.msra.mxu0 0
        %565 = vmatprep.mubr.bf16.mxu0 0
        %566 = vmatmul.mubr.bf16.gmra.mrb[0].mxu0 %v405
        %v567 = vpop.f32.mrb[0].mxu0
        %v568 = vadd.f32 0.0, %v567
        %v569 = vpop.f32.mrb[0].mxu0
        %v570 = vadd.f32 0.0, %v569
        %v571 = vpop.f32.mrb[0].mxu0
        %v572 = vadd.f32 0.0, %v571
        %v573 = vpop.f32.mrb[0].mxu0
        %v574 = vadd.f32 0.0, %v573
        %575 = vdwg.mxu0
        %v576 = vmax.f32 %v568, 0.0
        %v577 = vmax.f32 %v570, 0.0
        %v578 = vmax.f32 %v572, 0.0
        %v579 = vmax.f32 %v574, 0.0
        %v580 = vpack.c.bf16 %v578, %v576
        %v581 = vpack.c.bf16 %v579, %v577
        %v582 = vld [vmem:[%s2 + $0x100] sm:$0xff]
        %v583 = vld [vmem:[%s2 + $0x108] sm:$0xff]
        %v584 = vld [vmem:[%s2 + $0x110] sm:$0xff]
        %v585 = vld [vmem:[%s2 + $0x118] sm:$0xff]
        %v586 = vld [vmem:[%s2 + $0x120] sm:$0xff]
        %v587 = vld [vmem:[%s2 + $0x128] sm:$0xff]
        %v588 = vld [vmem:[%s2 + $0x130] sm:$0xff]
        %v589 = vld [vmem:[%s2 + $0x138] sm:$0xff]
        %v590 = vld [vmem:[%s2 + $0x140] sm:$0xff]
        %v591 = vld [vmem:[%s2 + $0x148] sm:$0xff]
        %v592 = vld [vmem:[%s2 + $0x150] sm:$0xff]
        %v593 = vld [vmem:[%s2 + $0x158] sm:$0xff]
        %v594 = vld [vmem:[%s2 + $0x160] sm:$0xff]
        %v595 = vld [vmem:[%s2 + $0x168] sm:$0xff]
        %v596 = vld [vmem:[%s2 + $0x170] sm:$0xff]
        %v597 = vld [vmem:[%s2 + $0x178] sm:$0xff]
        %v598 = vld [vmem:[%s2 + $0x180] sm:$0xff]
        %v599 = vld [vmem:[%s2 + $0x188] sm:$0xff]
        %v600 = vld [vmem:[%s2 + $0x190] sm:$0xff]
        %v601 = vld [vmem:[%s2 + $0x198] sm:$0xff]
        %v602 = vld [vmem:[%s2 + $0x1a0] sm:$0xff]
        %v603 = vld [vmem:[%s2 + $0x1a8] sm:$0xff]
        %v604 = vld [vmem:[%s2 + $0x1b0] sm:$0xff]
        %v605 = vld [vmem:[%s2 + $0x1b8] sm:$0xff]
        %v606 = vld [vmem:[%s2 + $0x1c0] sm:$0xff]
        %v607 = vld [vmem:[%s2 + $0x1c8] sm:$0xff]
        %v608 = vld [vmem:[%s2 + $0x1d0] sm:$0xff]
        %v609 = vld [vmem:[%s2 + $0x1d8] sm:$0xff]
        %v610 = vld [vmem:[%s2 + $0x1e0] sm:$0xff]
        %v611 = vld [vmem:[%s2 + $0x1e8] sm:$0xff]
        %v612 = vld [vmem:[%s2 + $0x1f0] sm:$0xff]
        %v613 = vld [vmem:[%s2 + $0x1f8] sm:$0xff]
        %v646 = vunpack.c.l.b16 %v582
        %v647 = vunpack.c.h.b16 %v582
        %v648 = vunpack.c.l.b16 %v583
        %v649 = vunpack.c.h.b16 %v583
        %v650 = vunpack.c.l.b16 %v584
        %v651 = vunpack.c.h.b16 %v584
        %v652 = vunpack.c.l.b16 %v585
        %v653 = vunpack.c.h.b16 %v585
        %v654 = vunpack.c.l.b16 %v586
        %v655 = vunpack.c.h.b16 %v586
        %v656 = vunpack.c.l.b16 %v587
        %v657 = vunpack.c.h.b16 %v587
        %v658 = vunpack.c.l.b16 %v588
        %v659 = vunpack.c.h.b16 %v588
        %v660 = vunpack.c.l.b16 %v589
        %v661 = vunpack.c.h.b16 %v589
        %v662 = vunpack.c.l.b16 %v590
        %v663 = vunpack.c.h.b16 %v590
        %v664 = vunpack.c.l.b16 %v591
        %v665 = vunpack.c.h.b16 %v591
        %v666 = vunpack.c.l.b16 %v592
        %v667 = vunpack.c.h.b16 %v592
        %v668 = vunpack.c.l.b16 %v593
        %v669 = vunpack.c.h.b16 %v593
        %v670 = vunpack.c.l.b16 %v594
        %v671 = vunpack.c.h.b16 %v594
        %v672 = vunpack.c.l.b16 %v595
        %v673 = vunpack.c.h.b16 %v595
        %v674 = vunpack.c.l.b16 %v596
        %v675 = vunpack.c.h.b16 %v596
        %v676 = vunpack.c.l.b16 %v597
        %v677 = vunpack.c.h.b16 %v597
        %v678 = vunpack.c.l.b16 %v598
        %v679 = vunpack.c.h.b16 %v598
        %v680 = vunpack.c.l.b16 %v599
        %v681 = vunpack.c.h.b16 %v599
        %v682 = vunpack.c.l.b16 %v600
        %v683 = vunpack.c.h.b16 %v600
        %v684 = vunpack.c.l.b16 %v601
        %v685 = vunpack.c.h.b16 %v601
        %v686 = vunpack.c.l.b16 %v602
        %v687 = vunpack.c.h.b16 %v602
        %v688 = vunpack.c.l.b16 %v603
        %v689 = vunpack.c.h.b16 %v603
        %v690 = vunpack.c.l.b16 %v604
        %v691 = vunpack.c.h.b16 %v604
        %v692 = vunpack.c.l.b16 %v605
        %v693 = vunpack.c.h.b16 %v605
        %v694 = vunpack.c.l.b16 %v606
        %v695 = vunpack.c.h.b16 %v606
        %v696 = vunpack.c.l.b16 %v607
        %v697 = vunpack.c.h.b16 %v607
        %v698 = vunpack.c.l.b16 %v608
        %v699 = vunpack.c.h.b16 %v608
        %v700 = vunpack.c.l.b16 %v609
        %v701 = vunpack.c.h.b16 %v609
        %v702 = vunpack.c.l.b16 %v610
        %v703 = vunpack.c.h.b16 %v610
        %v704 = vunpack.c.l.b16 %v611
        %v705 = vunpack.c.h.b16 %v611
        %v706 = vunpack.c.l.b16 %v612
        %v707 = vunpack.c.h.b16 %v612
        %v708 = vunpack.c.l.b16 %v613
        %v709 = vunpack.c.h.b16 %v613
        %v710 = vpack.c.b16 %v648, %v646
        %v711 = vpack.c.b16 %v649, %v647
        %v712 = vpack.c.b16 %v652, %v650
        %v713 = vpack.c.b16 %v653, %v651
        %v714 = vpack.c.b16 %v656, %v654
        %v715 = vpack.c.b16 %v657, %v655
        %v716 = vpack.c.b16 %v660, %v658
        %v717 = vpack.c.b16 %v661, %v659
        %v718 = vpack.c.b16 %v664, %v662
        %v719 = vpack.c.b16 %v665, %v663
        %v720 = vpack.c.b16 %v668, %v666
        %v721 = vpack.c.b16 %v669, %v667
        %v722 = vpack.c.b16 %v672, %v670
        %v723 = vpack.c.b16 %v673, %v671
        %v724 = vpack.c.b16 %v676, %v674
        %v725 = vpack.c.b16 %v677, %v675
        %v726 = vpack.c.b16 %v680, %v678
        %v727 = vpack.c.b16 %v681, %v679
        %v728 = vpack.c.b16 %v684, %v682
        %v729 = vpack.c.b16 %v685, %v683
        %v730 = vpack.c.b16 %v688, %v686
        %v731 = vpack.c.b16 %v689, %v687
        %v732 = vpack.c.b16 %v692, %v690
        %v733 = vpack.c.b16 %v693, %v691
        %v734 = vpack.c.b16 %v696, %v694
        %v735 = vpack.c.b16 %v697, %v695
        %v736 = vpack.c.b16 %v700, %v698
        %v737 = vpack.c.b16 %v701, %v699
        %v738 = vpack.c.b16 %v704, %v702
        %v739 = vpack.c.b16 %v705, %v703
        %v740 = vpack.c.b16 %v708, %v706
        %v741 = vpack.c.b16 %v709, %v707
        %774 = vmatprep.subr.bf16.mxu0 %v711
        %775 = vmatpush1.bf16.msra.mxu0 %v710
        %776 = vmatprep.subr.bf16.mxu0 %v713
        %777 = vmatpush1.bf16.msra.mxu0 %v712
        %778 = vmatprep.subr.bf16.mxu0 %v715
        %779 = vmatpush1.bf16.msra.mxu0 %v714
        %780 = vmatprep.subr.bf16.mxu0 %v717
        %781 = vmatpush1.bf16.msra.mxu0 %v716
        %782 = vmatprep.subr.bf16.mxu0 %v719
        %783 = vmatpush1.bf16.msra.mxu0 %v718
        %784 = vmatprep.subr.bf16.mxu0 %v721
        %785 = vmatpush1.bf16.msra.mxu0 %v720
        %786 = vmatprep.subr.bf16.mxu0 %v723
        %787 = vmatpush1.bf16.msra.mxu0 %v722
        %788 = vmatprep.subr.bf16.mxu0 %v725
        %789 = vmatpush1.bf16.msra.mxu0 %v724
        %790 = vmatprep.subr.bf16.mxu0 %v727
        %791 = vmatpush1.bf16.msra.mxu0 %v726
        %792 = vmatprep.subr.bf16.mxu0 %v729
        %793 = vmatpush1.bf16.msra.mxu0 %v728
        %794 = vmatprep.subr.bf16.mxu0 %v731
        %795 = vmatpush1.bf16.msra.mxu0 %v730
        %796 = vmatprep.subr.bf16.mxu0 %v733
        %797 = vmatpush1.bf16.msra.mxu0 %v732
        %798 = vmatprep.subr.bf16.mxu0 %v735
        %799 = vmatpush1.bf16.msra.mxu0 %v734
        %800 = vmatprep.subr.bf16.mxu0 %v737
        %801 = vmatpush1.bf16.msra.mxu0 %v736
        %802 = vmatprep.subr.bf16.mxu0 %v739
        %803 = vmatpush1.bf16.msra.mxu0 %v738
        %804 = vmatprep.subr.bf16.mxu0 %v741
        %805 = vmatpush1.bf16.msra.mxu0 %v740
        %806 = vmatprep.mubr.bf16.mxu0 %v581
        %807 = vmatmul.mubr.bf16.gmra.mrb[0].mxu0 %v580
        %v808 = vpop.f32.mrb[0].mxu0
        %v809 = vadd.f32 0.0, %v808
        %v810 = vpop.f32.mrb[0].mxu0
        %v811 = vadd.f32 0.0, %v810
        %v812 = vpop.f32.mrb[0].mxu0
        %v813 = vadd.f32 0.0, %v812
        %v814 = vpop.f32.mrb[0].mxu0
        %v815 = vadd.f32 0.0, %v814
        %816 = vdwg.mxu0
        %v849 = vunpack.c.l.b16 %v465
        %v850 = vunpack.c.h.b16 %v465
        %v851 = vunpack.c.l.b16 %v466
        %v852 = vunpack.c.h.b16 %v466
        %v853 = vunpack.c.l.b16 %v467
        %v854 = vunpack.c.h.b16 %v467
        %v855 = vunpack.c.l.b16 %v468
        %v856 = vunpack.c.h.b16 %v468
        %v857 = vunpack.c.l.b16 %v469
        %v858 = vunpack.c.h.b16 %v469
        %v859 = vunpack.c.l.b16 %v470
        %v860 = vunpack.c.h.b16 %v470
        %v861 = vunpack.c.l.b16 %v471
        %v862 = vunpack.c.h.b16 %v471
        %v863 = vunpack.c.l.b16 %v472
        %v864 = vunpack.c.h.b16 %v472
        %v865 = vunpack.c.l.b16 %v473
        %v866 = vunpack.c.h.b16 %v473
        %v867 = vunpack.c.l.b16 %v474
        %v868 = vunpack.c.h.b16 %v474
        %v869 = vunpack.c.l.b16 %v475
        %v870 = vunpack.c.h.b16 %v475
        %v871 = vunpack.c.l.b16 %v476
        %v872 = vunpack.c.h.b16 %v476
        %v873 = vunpack.c.l.b16 %v477
        %v874 = vunpack.c.h.b16 %v477
        %v875 = vunpack.c.l.b16 %v478
        %v876 = vunpack.c.h.b16 %v478
        %v877 = vunpack.c.l.b16 %v479
        %v878 = vunpack.c.h.b16 %v479
        %v879 = vunpack.c.l.b16 %v480
        %v880 = vunpack.c.h.b16 %v480
        %v881 = vunpack.c.l.b16 %v481
        %v882 = vunpack.c.h.b16 %v481
        %v883 = vunpack.c.l.b16 %v482
        %v884 = vunpack.c.h.b16 %v482
        %v885 = vunpack.c.l.b16 %v483
        %v886 = vunpack.c.h.b16 %v483
        %v887 = vunpack.c.l.b16 %v484
        %v888 = vunpack.c.h.b16 %v484
        %v889 = vunpack.c.l.b16 %v485
        %v890 = vunpack.c.h.b16 %v485
        %v891 = vunpack.c.l.b16 %v486
        %v892 = vunpack.c.h.b16 %v486
        %v893 = vunpack.c.l.b16 %v487
        %v894 = vunpack.c.h.b16 %v487
        %v895 = vunpack.c.l.b16 %v488
        %v896 = vunpack.c.h.b16 %v488
        %v897 = vunpack.c.l.b16 %v489
        %v898 = vunpack.c.h.b16 %v489
        %v899 = vunpack.c.l.b16 %v490
        %v900 = vunpack.c.h.b16 %v490
        %v901 = vunpack.c.l.b16 %v491
        %v902 = vunpack.c.h.b16 %v491
        %v903 = vunpack.c.l.b16 %v492
        %v904 = vunpack.c.h.b16 %v492
        %v905 = vunpack.c.l.b16 %v493
        %v906 = vunpack.c.h.b16 %v493
        %v907 = vunpack.c.l.b16 %v494
        %v908 = vunpack.c.h.b16 %v494
        %v909 = vunpack.c.l.b16 %v495
        %v910 = vunpack.c.h.b16 %v495
        %v911 = vunpack.c.l.b16 %v496
        %v912 = vunpack.c.h.b16 %v496
        %v913 = vpack.c.b16 %v851, %v849
        %v914 = vpack.c.b16 %v852, %v850
        %v915 = vpack.c.b16 %v855, %v853
        %v916 = vpack.c.b16 %v856, %v854
        %v917 = vpack.c.b16 %v859, %v857
        %v918 = vpack.c.b16 %v860, %v858
        %v919 = vpack.c.b16 %v863, %v861
        %v920 = vpack.c.b16 %v864, %v862
        %v921 = vpack.c.b16 %v867, %v865
        %v922 = vpack.c.b16 %v868, %v866
        %v923 = vpack.c.b16 %v871, %v869
        %v924 = vpack.c.b16 %v872, %v870
        %v925 = vpack.c.b16 %v875, %v873
        %v926 = vpack.c.b16 %v876, %v874
        %v927 = vpack.c.b16 %v879, %v877
        %v928 = vpack.c.b16 %v880, %v878
        %v929 = vpack.c.b16 %v883, %v881
        %v930 = vpack.c.b16 %v884, %v882
        %v931 = vpack.c.b16 %v887, %v885
        %v932 = vpack.c.b16 %v888, %v886
        %v933 = vpack.c.b16 %v891, %v889
        %v934 = vpack.c.b16 %v892, %v890
        %v935 = vpack.c.b16 %v895, %v893
        %v936 = vpack.c.b16 %v896, %v894
        %v937 = vpack.c.b16 %v899, %v897
        %v938 = vpack.c.b16 %v900, %v898
        %v939 = vpack.c.b16 %v903, %v901
        %v940 = vpack.c.b16 %v904, %v902
        %v941 = vpack.c.b16 %v907, %v905
        %v942 = vpack.c.b16 %v908, %v906
        %v943 = vpack.c.b16 %v911, %v909
        %v944 = vpack.c.b16 %v912, %v910
        %977 = vmatprep.subr.bf16.mxu0 %v914
        %978 = vmatpush1.bf16.msra.mxu0 %v913
        %979 = vmatprep.subr.bf16.mxu0 %v916
        %980 = vmatpush1.bf16.msra.mxu0 %v915
        %981 = vmatprep.subr.bf16.mxu0 %v918
        %982 = vmatpush1.bf16.msra.mxu0 %v917
        %983 = vmatprep.subr.bf16.mxu0 %v920
        %984 = vmatpush1.bf16.msra.mxu0 %v919
        %985 = vmatprep.subr.bf16.mxu0 %v922
        %986 = vmatpush1.bf16.msra.mxu0 %v921
        %987 = vmatprep.subr.bf16.mxu0 %v924
        %988 = vmatpush1.bf16.msra.mxu0 %v923
        %989 = vmatprep.subr.bf16.mxu0 %v926
        %990 = vmatpush1.bf16.msra.mxu0 %v925
        %991 = vmatprep.subr.bf16.mxu0 %v928
        %992 = vmatpush1.bf16.msra.mxu0 %v927
        %993 = vmatprep.subr.bf16.mxu0 %v930
        %994 = vmatpush1.bf16.msra.mxu0 %v929
        %995 = vmatprep.subr.bf16.mxu0 %v932
        %996 = vmatpush1.bf16.msra.mxu0 %v931
        %997 = vmatprep.subr.bf16.mxu0 %v934
        %998 = vmatpush1.bf16.msra.mxu0 %v933
        %999 = vmatprep.subr.bf16.mxu0 %v936
        %1000 = vmatpush1.bf16.msra.mxu0 %v935
        %1001 = vmatprep.subr.bf16.mxu0 %v938
        %1002 = vmatpush1.bf16.msra.mxu0 %v937
        %1003 = vmatprep.subr.bf16.mxu0 %v940
        %1004 = vmatpush1.bf16.msra.mxu0 %v939
        %1005 = vmatprep.subr.bf16.mxu0 %v942
        %1006 = vmatpush1.bf16.msra.mxu0 %v941
        %1007 = vmatprep.subr.bf16.mxu0 %v944
        %1008 = vmatpush1.bf16.msra.mxu0 %v943
        %1009 = vmatprep.mubr.bf16.mxu0 %v464
        %1010 = vmatmul.mubr.bf16.gmra.mrb[0].mxu0 %v463
        %v1011 = vpop.f32.mrb[0].mxu0
        %v1012 = vadd.f32 %v809, %v1011
        %v1013 = vpop.f32.mrb[0].mxu0
        %v1014 = vadd.f32 %v811, %v1013
        %v1015 = vpop.f32.mrb[0].mxu0
        %v1016 = vadd.f32 %v813, %v1015
        %v1017 = vpop.f32.mrb[0].mxu0
        %v1018 = vadd.f32 %v815, %v1017
        %1019 = vdwg.mxu0
        %v1020 = vld [vmem:[%s1 + $0x10] sm:$0xff]
        %v1021 = vld [vmem:[%s1 + $0x30] sm:$0xff]
        %v1022 = vld [vmem:[%s1 + $0x50] sm:$0xff]
        %v1023 = vld [vmem:[%s1 + $0x70] sm:$0xff]
        %v1024 = vld [vmem:[%s1 + $0x90] sm:$0x11]
        %v1030 = vunpack.c.l.b16 %v1020
        %v1031 = vunpack.c.h.b16 %v1020
        %v1032 = vunpack.c.l.b16 %v1021
        %v1033 = vunpack.c.h.b16 %v1021
        %v1034 = vunpack.c.l.b16 %v1022
        %v1035 = vunpack.c.h.b16 %v1022
        %v1036 = vunpack.c.l.b16 %v1023
        %v1037 = vunpack.c.h.b16 %v1023
        %v1038 = vunpack.c.l.b16 %v1024
        %v1039 = vunpack.c.h.b16 %v1024
        %v1040 = vpack.c.b16 %v1032, %v1030
        %v1041 = vpack.c.b16 %v1033, %v1031
        %v1042 = vpack.c.b16 %v1036, %v1034
        %v1043 = vpack.c.b16 %v1037, %v1035
        %v1044 = vpack.c.b16 %v1038, %v1038
        %v1045 = vpack.c.b16 %v1039, %v1039
        %v1051 = vand.u32 %v1044, %v409
        %v1054 = vand.u32 %v1045, %v409
        %1056 = vmatprep.subr.bf16.mxu0 %v1041
        %1057 = vmatpush1.bf16.msra.mxu0 %v1040
        %1058 = vmatprep.subr.bf16.mxu0 %v1043
        %1059 = vmatpush1.bf16.msra.mxu0 %v1042
        %1060 = vmatprep.subr.bf16.mxu0 %v1054
        %1061 = vmatpush1.bf16.msra.mxu0 %v1051
        %1062 = vmatprep.subr.bf16.mxu0 0
        %1063 = vmatpush1.bf16.msra.mxu0 0
        %1064 = vmatprep.subr.bf16.mxu0 0
        %1065 = vmatpush1.bf16.msra.mxu0 0
        %1066 = vmatprep.subr.bf16.mxu0 0
        %1067 = vmatpush1.bf16.msra.mxu0 0
        %1068 = vmatprep.subr.bf16.mxu0 0
        %1069 = vmatpush1.bf16.msra.mxu0 0
        %1070 = vmatprep.subr.bf16.mxu0 0
        %1071 = vmatpush1.bf16.msra.mxu0 0
        %1072 = vmatprep.subr.bf16.mxu0 0
        %1073 = vmatpush1.bf16.msra.mxu0 0
        %1074 = vmatprep.subr.bf16.mxu0 0
        %1075 = vmatpush1.bf16.msra.mxu0 0
        %1076 = vmatprep.subr.bf16.mxu0 0
        %1077 = vmatpush1.bf16.msra.mxu0 0
        %1078 = vmatprep.subr.bf16.mxu0 0
        %1079 = vmatpush1.bf16.msra.mxu0 0
        %1080 = vmatprep.subr.bf16.mxu0 0
        %1081 = vmatpush1.bf16.msra.mxu0 0
        %1082 = vmatprep.subr.bf16.mxu0 0
        %1083 = vmatpush1.bf16.msra.mxu0 0
        %1084 = vmatprep.subr.bf16.mxu0 0
        %1085 = vmatpush1.bf16.msra.mxu0 0
        %1086 = vmatprep.subr.bf16.mxu0 0
        %1087 = vmatpush1.bf16.msra.mxu0 0
        %1088 = vmatprep.mubr.bf16.mxu0 0
        %1089 = vmatmul.mubr.bf16.gmra.mrb[0].mxu0 %v405
        %v1090 = vpop.f32.mrb[0].mxu0
        %v1091 = vadd.f32 0.0, %v1090
        %v1092 = vpop.f32.mrb[0].mxu0
        %v1093 = vadd.f32 0.0, %v1092
        %v1094 = vpop.f32.mrb[0].mxu0
        %v1095 = vadd.f32 0.0, %v1094
        %v1096 = vpop.f32.mrb[0].mxu0
        %v1097 = vadd.f32 0.0, %v1096
        %1098 = vdwg.mxu0
        %v1099 = vmax.f32 %v1091, 0.0
        %v1100 = vmax.f32 %v1093, 0.0
        %v1101 = vmax.f32 %v1095, 0.0
        %v1102 = vmax.f32 %v1097, 0.0
        %v1103 = vpack.c.bf16 %v1101, %v1099
        %v1104 = vpack.c.bf16 %v1102, %v1100
        %v1105 = vld [vmem:[%s2 + $0x200] sm:$0xff]
        %v1106 = vld [vmem:[%s2 + $0x208] sm:$0xff]
        %v1107 = vld [vmem:[%s2 + $0x210] sm:$0xff]
        %v1108 = vld [vmem:[%s2 + $0x218] sm:$0xff]
        %v1109 = vld [vmem:[%s2 + $0x220] sm:$0xff]
        %v1110 = vld [vmem:[%s2 + $0x228] sm:$0xff]
        %v1111 = vld [vmem:[%s2 + $0x230] sm:$0xff]
        %v1112 = vld [vmem:[%s2 + $0x238] sm:$0xff]
        %v1113 = vld [vmem:[%s2 + $0x240] sm:$0xff]
        %v1114 = vld [vmem:[%s2 + $0x248] sm:$0xff]
        %v1115 = vld [vmem:[%s2 + $0x250] sm:$0xff]
        %v1116 = vld [vmem:[%s2 + $0x258] sm:$0xff]
        %v1117 = vld [vmem:[%s2 + $0x260] sm:$0xff]
        %v1118 = vld [vmem:[%s2 + $0x268] sm:$0xff]
        %v1119 = vld [vmem:[%s2 + $0x270] sm:$0xff]
        %v1120 = vld [vmem:[%s2 + $0x278] sm:$0xff]
        %v1121 = vld [vmem:[%s2 + $0x280] sm:$0xff]
        %v1122 = vld [vmem:[%s2 + $0x288] sm:$0xff]
        %v1123 = vld [vmem:[%s2 + $0x290] sm:$0xff]
        %v1124 = vld [vmem:[%s2 + $0x298] sm:$0xff]
        %v1125 = vld [vmem:[%s2 + $0x2a0] sm:$0xff]
        %v1126 = vld [vmem:[%s2 + $0x2a8] sm:$0xff]
        %v1127 = vld [vmem:[%s2 + $0x2b0] sm:$0xff]
        %v1128 = vld [vmem:[%s2 + $0x2b8] sm:$0xff]
        %v1129 = vld [vmem:[%s2 + $0x2c0] sm:$0xff]
        %v1130 = vld [vmem:[%s2 + $0x2c8] sm:$0xff]
        %v1131 = vld [vmem:[%s2 + $0x2d0] sm:$0xff]
        %v1132 = vld [vmem:[%s2 + $0x2d8] sm:$0xff]
        %v1133 = vld [vmem:[%s2 + $0x2e0] sm:$0xff]
        %v1134 = vld [vmem:[%s2 + $0x2e8] sm:$0xff]
        %v1135 = vld [vmem:[%s2 + $0x2f0] sm:$0xff]
        %v1136 = vld [vmem:[%s2 + $0x2f8] sm:$0xff]
        %v1169 = vunpack.c.l.b16 %v1105
        %v1170 = vunpack.c.h.b16 %v1105
        %v1171 = vunpack.c.l.b16 %v1106
        %v1172 = vunpack.c.h.b16 %v1106
        %v1173 = vunpack.c.l.b16 %v1107
        %v1174 = vunpack.c.h.b16 %v1107
        %v1175 = vunpack.c.l.b16 %v1108
        %v1176 = vunpack.c.h.b16 %v1108
        %v1177 = vunpack.c.l.b16 %v1109
        %v1178 = vunpack.c.h.b16 %v1109
        %v1179 = vunpack.c.l.b16 %v1110
        %v1180 = vunpack.c.h.b16 %v1110
        %v1181 = vunpack.c.l.b16 %v1111
        %v1182 = vunpack.c.h.b16 %v1111
        %v1183 = vunpack.c.l.b16 %v1112
        %v1184 = vunpack.c.h.b16 %v1112
        %v1185 = vunpack.c.l.b16 %v1113
        %v1186 = vunpack.c.h.b16 %v1113
        %v1187 = vunpack.c.l.b16 %v1114
        %v1188 = vunpack.c.h.b16 %v1114
        %v1189 = vunpack.c.l.b16 %v1115
        %v1190 = vunpack.c.h.b16 %v1115
        %v1191 = vunpack.c.l.b16 %v1116
        %v1192 = vunpack.c.h.b16 %v1116
        %v1193 = vunpack.c.l.b16 %v1117
        %v1194 = vunpack.c.h.b16 %v1117
        %v1195 = vunpack.c.l.b16 %v1118
        %v1196 = vunpack.c.h.b16 %v1118
        %v1197 = vunpack.c.l.b16 %v1119
        %v1198 = vunpack.c.h.b16 %v1119
        %v1199 = vunpack.c.l.b16 %v1120
        %v1200 = vunpack.c.h.b16 %v1120
        %v1201 = vunpack.c.l.b16 %v1121
        %v1202 = vunpack.c.h.b16 %v1121
        %v1203 = vunpack.c.l.b16 %v1122
        %v1204 = vunpack.c.h.b16 %v1122
        %v1205 = vunpack.c.l.b16 %v1123
        %v1206 = vunpack.c.h.b16 %v1123
        %v1207 = vunpack.c.l.b16 %v1124
        %v1208 = vunpack.c.h.b16 %v1124
        %v1209 = vunpack.c.l.b16 %v1125
        %v1210 = vunpack.c.h.b16 %v1125
        %v1211 = vunpack.c.l.b16 %v1126
        %v1212 = vunpack.c.h.b16 %v1126
        %v1213 = vunpack.c.l.b16 %v1127
        %v1214 = vunpack.c.h.b16 %v1127
        %v1215 = vunpack.c.l.b16 %v1128
        %v1216 = vunpack.c.h.b16 %v1128
        %v1217 = vunpack.c.l.b16 %v1129
        %v1218 = vunpack.c.h.b16 %v1129
        %v1219 = vunpack.c.l.b16 %v1130
        %v1220 = vunpack.c.h.b16 %v1130
        %v1221 = vunpack.c.l.b16 %v1131
        %v1222 = vunpack.c.h.b16 %v1131
        %v1223 = vunpack.c.l.b16 %v1132
        %v1224 = vunpack.c.h.b16 %v1132
        %v1225 = vunpack.c.l.b16 %v1133
        %v1226 = vunpack.c.h.b16 %v1133
        %v1227 = vunpack.c.l.b16 %v1134
        %v1228 = vunpack.c.h.b16 %v1134
        %v1229 = vunpack.c.l.b16 %v1135
        %v1230 = vunpack.c.h.b16 %v1135
        %v1231 = vunpack.c.l.b16 %v1136
        %v1232 = vunpack.c.h.b16 %v1136
        %v1233 = vpack.c.b16 %v1171, %v1169
        %v1234 = vpack.c.b16 %v1172, %v1170
        %v1235 = vpack.c.b16 %v1175, %v1173
        %v1236 = vpack.c.b16 %v1176, %v1174
        %v1237 = vpack.c.b16 %v1179, %v1177
        %v1238 = vpack.c.b16 %v1180, %v1178
        %v1239 = vpack.c.b16 %v1183, %v1181
        %v1240 = vpack.c.b16 %v1184, %v1182
        %v1241 = vpack.c.b16 %v1187, %v1185
        %v1242 = vpack.c.b16 %v1188, %v1186
        %v1243 = vpack.c.b16 %v1191, %v1189
        %v1244 = vpack.c.b16 %v1192, %v1190
        %v1245 = vpack.c.b16 %v1195, %v1193
        %v1246 = vpack.c.b16 %v1196, %v1194
        %v1247 = vpack.c.b16 %v1199, %v1197
        %v1248 = vpack.c.b16 %v1200, %v1198
        %v1249 = vpack.c.b16 %v1203, %v1201
        %v1250 = vpack.c.b16 %v1204, %v1202
        %v1251 = vpack.c.b16 %v1207, %v1205
        %v1252 = vpack.c.b16 %v1208, %v1206
        %v1253 = vpack.c.b16 %v1211, %v1209
        %v1254 = vpack.c.b16 %v1212, %v1210
        %v1255 = vpack.c.b16 %v1215, %v1213
        %v1256 = vpack.c.b16 %v1216, %v1214
        %v1257 = vpack.c.b16 %v1219, %v1217
        %v1258 = vpack.c.b16 %v1220, %v1218
        %v1259 = vpack.c.b16 %v1223, %v1221
        %v1260 = vpack.c.b16 %v1224, %v1222
        %v1261 = vpack.c.b16 %v1227, %v1225
        %v1262 = vpack.c.b16 %v1228, %v1226
        %v1263 = vpack.c.b16 %v1231, %v1229
        %v1264 = vpack.c.b16 %v1232, %v1230
        %1297 = vmatprep.subr.bf16.mxu0 %v1234
        %1298 = vmatpush1.bf16.msra.mxu0 %v1233
        %1299 = vmatprep.subr.bf16.mxu0 %v1236
        %1300 = vmatpush1.bf16.msra.mxu0 %v1235
        %1301 = vmatprep.subr.bf16.mxu0 %v1238
        %1302 = vmatpush1.bf16.msra.mxu0 %v1237
        %1303 = vmatprep.subr.bf16.mxu0 %v1240
        %1304 = vmatpush1.bf16.msra.mxu0 %v1239
        %1305 = vmatprep.subr.bf16.mxu0 %v1242
        %1306 = vmatpush1.bf16.msra.mxu0 %v1241
        %1307 = vmatprep.subr.bf16.mxu0 %v1244
        %1308 = vmatpush1.bf16.msra.mxu0 %v1243
        %1309 = vmatprep.subr.bf16.mxu0 %v1246
        %1310 = vmatpush1.bf16.msra.mxu0 %v1245
        %1311 = vmatprep.subr.bf16.mxu0 %v1248
        %1312 = vmatpush1.bf16.msra.mxu0 %v1247
        %1313 = vmatprep.subr.bf16.mxu0 %v1250
        %1314 = vmatpush1.bf16.msra.mxu0 %v1249
        %1315 = vmatprep.subr.bf16.mxu0 %v1252
        %1316 = vmatpush1.bf16.msra.mxu0 %v1251
        %1317 = vmatprep.subr.bf16.mxu0 %v1254
        %1318 = vmatpush1.bf16.msra.mxu0 %v1253
        %1319 = vmatprep.subr.bf16.mxu0 %v1256
        %1320 = vmatpush1.bf16.msra.mxu0 %v1255
        %1321 = vmatprep.subr.bf16.mxu0 %v1258
        %1322 = vmatpush1.bf16.msra.mxu0 %v1257
        %1323 = vmatprep.subr.bf16.mxu0 %v1260
        %1324 = vmatpush1.bf16.msra.mxu0 %v1259
        %1325 = vmatprep.subr.bf16.mxu0 %v1262
        %1326 = vmatpush1.bf16.msra.mxu0 %v1261
        %1327 = vmatprep.subr.bf16.mxu0 %v1264
        %1328 = vmatpush1.bf16.msra.mxu0 %v1263
        %1329 = vmatprep.mubr.bf16.mxu0 %v1104
        %1330 = vmatmul.mubr.bf16.gmra.mrb[0].mxu0 %v1103
        %v1331 = vpop.f32.mrb[0].mxu0
        %v1332 = vadd.f32 0.0, %v1331
        %v1333 = vpop.f32.mrb[0].mxu0
        %v1334 = vadd.f32 0.0, %v1333
        %v1335 = vpop.f32.mrb[0].mxu0
        %v1336 = vadd.f32 0.0, %v1335
        %v1337 = vpop.f32.mrb[0].mxu0
        %v1338 = vadd.f32 0.0, %v1337
        %1339 = vdwg.mxu0
        %v1340 = vadd.f32 %v1012, %v1332
        %v1341 = vadd.f32 %v1014, %v1334
        %v1342 = vadd.f32 %v1016, %v1336
        %v1343 = vadd.f32 %v1018, %v1338
        %v1344 = vld [vmem:[%s1 + $0x18] sm:$0xff]
        %v1345 = vld [vmem:[%s1 + $0x38] sm:$0xff]
        %v1346 = vld [vmem:[%s1 + $0x58] sm:$0xff]
        %v1347 = vld [vmem:[%s1 + $0x78] sm:$0xff]
        %v1348 = vld [vmem:[%s1 + $0x98] sm:$0x11]
        %v1354 = vunpack.c.l.b16 %v1344
        %v1355 = vunpack.c.h.b16 %v1344
        %v1356 = vunpack.c.l.b16 %v1345
        %v1357 = vunpack.c.h.b16 %v1345
        %v1358 = vunpack.c.l.b16 %v1346
        %v1359 = vunpack.c.h.b16 %v1346
        %v1360 = vunpack.c.l.b16 %v1347
        %v1361 = vunpack.c.h.b16 %v1347
        %v1362 = vunpack.c.l.b16 %v1348
        %v1363 = vunpack.c.h.b16 %v1348
        %v1364 = vpack.c.b16 %v1356, %v1354
        %v1365 = vpack.c.b16 %v1357, %v1355
        %v1366 = vpack.c.b16 %v1360, %v1358
        %v1367 = vpack.c.b16 %v1361, %v1359
        %v1368 = vpack.c.b16 %v1362, %v1362
        %v1369 = vpack.c.b16 %v1363, %v1363
        %v1375 = vand.u32 %v1368, %v409
        %v1378 = vand.u32 %v1369, %v409
        %1380 = vmatprep.subr.bf16.mxu0 %v1365
        %1381 = vmatpush1.bf16.msra.mxu0 %v1364
        %1382 = vmatprep.subr.bf16.mxu0 %v1367
        %1383 = vmatpush1.bf16.msra.mxu0 %v1366
        %1384 = vmatprep.subr.bf16.mxu0 %v1378
        %1385 = vmatpush1.bf16.msra.mxu0 %v1375
        %1386 = vmatprep.subr.bf16.mxu0 0
        %1387 = vmatpush1.bf16.msra.mxu0 0
        %1388 = vmatprep.subr.bf16.mxu0 0
        %1389 = vmatpush1.bf16.msra.mxu0 0
        %1390 = vmatprep.subr.bf16.mxu0 0
        %1391 = vmatpush1.bf16.msra.mxu0 0
        %1392 = vmatprep.subr.bf16.mxu0 0
        %1393 = vmatpush1.bf16.msra.mxu0 0
        %1394 = vmatprep.subr.bf16.mxu0 0
        %1395 = vmatpush1.bf16.msra.mxu0 0
        %1396 = vmatprep.subr.bf16.mxu0 0
        %1397 = vmatpush1.bf16.msra.mxu0 0
        %1398 = vmatprep.subr.bf16.mxu0 0
        %1399 = vmatpush1.bf16.msra.mxu0 0
        %1400 = vmatprep.subr.bf16.mxu0 0
        %1401 = vmatpush1.bf16.msra.mxu0 0
        %1402 = vmatprep.subr.bf16.mxu0 0
        %1403 = vmatpush1.bf16.msra.mxu0 0
        %1404 = vmatprep.subr.bf16.mxu0 0
        %1405 = vmatpush1.bf16.msra.mxu0 0
        %1406 = vmatprep.subr.bf16.mxu0 0
        %1407 = vmatpush1.bf16.msra.mxu0 0
        %1408 = vmatprep.subr.bf16.mxu0 0
        %1409 = vmatpush1.bf16.msra.mxu0 0
        %1410 = vmatprep.subr.bf16.mxu0 0
        %1411 = vmatpush1.bf16.msra.mxu0 0
        %1412 = vmatprep.mubr.bf16.mxu0 0
        %1413 = vmatmul.mubr.bf16.gmra.mrb[0].mxu0 %v405
        %v1414 = vpop.f32.mrb[0].mxu0
        %v1415 = vadd.f32 0.0, %v1414
        %v1416 = vpop.f32.mrb[0].mxu0
        %v1417 = vadd.f32 0.0, %v1416
        %v1418 = vpop.f32.mrb[0].mxu0
        %v1419 = vadd.f32 0.0, %v1418
        %v1420 = vpop.f32.mrb[0].mxu0
        %v1421 = vadd.f32 0.0, %v1420
        %1422 = vdwg.mxu0
        %v1423 = vmax.f32 %v1415, 0.0
        %v1424 = vmax.f32 %v1417, 0.0
        %v1425 = vmax.f32 %v1419, 0.0
        %v1426 = vmax.f32 %v1421, 0.0
        %v1427 = vpack.c.bf16 %v1425, %v1423
        %v1428 = vpack.c.bf16 %v1426, %v1424
        %v1429 = vld [vmem:[%s2 + $0x300] sm:$0xff]
        %v1430 = vld [vmem:[%s2 + $0x308] sm:$0xff]
        %v1431 = vld [vmem:[%s2 + $0x310] sm:$0xff]
        %v1432 = vld [vmem:[%s2 + $0x318] sm:$0xff]
        %v1433 = vld [vmem:[%s2 + $0x320] sm:$0xff]
        %v1434 = vld [vmem:[%s2 + $0x328] sm:$0xff]
        %v1435 = vld [vmem:[%s2 + $0x330] sm:$0xff]
        %v1436 = vld [vmem:[%s2 + $0x338] sm:$0xff]
        %v1437 = vld [vmem:[%s2 + $0x340] sm:$0xff]
        %v1438 = vld [vmem:[%s2 + $0x348] sm:$0xff]
        %v1439 = vld [vmem:[%s2 + $0x350] sm:$0xff]
        %v1440 = vld [vmem:[%s2 + $0x358] sm:$0xff]
        %v1441 = vld [vmem:[%s2 + $0x360] sm:$0xff]
        %v1442 = vld [vmem:[%s2 + $0x368] sm:$0xff]
        %v1443 = vld [vmem:[%s2 + $0x370] sm:$0xff]
        %v1444 = vld [vmem:[%s2 + $0x378] sm:$0xff]
        %v1445 = vld [vmem:[%s2 + $0x380] sm:$0xff]
        %v1446 = vld [vmem:[%s2 + $0x388] sm:$0xff]
        %v1447 = vld [vmem:[%s2 + $0x390] sm:$0xff]
        %v1448 = vld [vmem:[%s2 + $0x398] sm:$0xff]
        %v1449 = vld [vmem:[%s2 + $0x3a0] sm:$0xff]
        %v1450 = vld [vmem:[%s2 + $0x3a8] sm:$0xff]
        %v1451 = vld [vmem:[%s2 + $0x3b0] sm:$0xff]
        %v1452 = vld [vmem:[%s2 + $0x3b8] sm:$0xff]
        %v1453 = vld [vmem:[%s2 + $0x3c0] sm:$0xff]
        %v1454 = vld [vmem:[%s2 + $0x3c8] sm:$0xff]
        %v1455 = vld [vmem:[%s2 + $0x3d0] sm:$0xff]
        %v1456 = vld [vmem:[%s2 + $0x3d8] sm:$0xff]
        %v1457 = vld [vmem:[%s2 + $0x3e0] sm:$0xff]
        %v1458 = vld [vmem:[%s2 + $0x3e8] sm:$0xff]
        %v1459 = vld [vmem:[%s2 + $0x3f0] sm:$0xff]
        %v1460 = vld [vmem:[%s2 + $0x3f8] sm:$0xff]
        %v1493 = vunpack.c.l.b16 %v1429
        %v1494 = vunpack.c.h.b16 %v1429
        %v1495 = vunpack.c.l.b16 %v1430
        %v1496 = vunpack.c.h.b16 %v1430
        %v1497 = vunpack.c.l.b16 %v1431
        %v1498 = vunpack.c.h.b16 %v1431
        %v1499 = vunpack.c.l.b16 %v1432
        %v1500 = vunpack.c.h.b16 %v1432
        %v1501 = vunpack.c.l.b16 %v1433
        %v1502 = vunpack.c.h.b16 %v1433
        %v1503 = vunpack.c.l.b16 %v1434
        %v1504 = vunpack.c.h.b16 %v1434
        %v1505 = vunpack.c.l.b16 %v1435
        %v1506 = vunpack.c.h.b16 %v1435
        %v1507 = vunpack.c.l.b16 %v1436
        %v1508 = vunpack.c.h.b16 %v1436
        %v1509 = vunpack.c.l.b16 %v1437
        %v1510 = vunpack.c.h.b16 %v1437
        %v1511 = vunpack.c.l.b16 %v1438
        %v1512 = vunpack.c.h.b16 %v1438
        %v1513 = vunpack.c.l.b16 %v1439
        %v1514 = vunpack.c.h.b16 %v1439
        %v1515 = vunpack.c.l.b16 %v1440
        %v1516 = vunpack.c.h.b16 %v1440
        %v1517 = vunpack.c.l.b16 %v1441
        %v1518 = vunpack.c.h.b16 %v1441
        %v1519 = vunpack.c.l.b16 %v1442
        %v1520 = vunpack.c.h.b16 %v1442
        %v1521 = vunpack.c.l.b16 %v1443
        %v1522 = vunpack.c.h.b16 %v1443
        %v1523 = vunpack.c.l.b16 %v1444
        %v1524 = vunpack.c.h.b16 %v1444
        %v1525 = vunpack.c.l.b16 %v1445
        %v1526 = vunpack.c.h.b16 %v1445
        %v1527 = vunpack.c.l.b16 %v1446
        %v1528 = vunpack.c.h.b16 %v1446
        %v1529 = vunpack.c.l.b16 %v1447
        %v1530 = vunpack.c.h.b16 %v1447
        %v1531 = vunpack.c.l.b16 %v1448
        %v1532 = vunpack.c.h.b16 %v1448
        %v1533 = vunpack.c.l.b16 %v1449
        %v1534 = vunpack.c.h.b16 %v1449
        %v1535 = vunpack.c.l.b16 %v1450
        %v1536 = vunpack.c.h.b16 %v1450
        %v1537 = vunpack.c.l.b16 %v1451
        %v1538 = vunpack.c.h.b16 %v1451
        %v1539 = vunpack.c.l.b16 %v1452
        %v1540 = vunpack.c.h.b16 %v1452
        %v1541 = vunpack.c.l.b16 %v1453
        %v1542 = vunpack.c.h.b16 %v1453
        %v1543 = vunpack.c.l.b16 %v1454
        %v1544 = vunpack.c.h.b16 %v1454
        %v1545 = vunpack.c.l.b16 %v1455
        %v1546 = vunpack.c.h.b16 %v1455
        %v1547 = vunpack.c.l.b16 %v1456
        %v1548 = vunpack.c.h.b16 %v1456
        %v1549 = vunpack.c.l.b16 %v1457
        %v1550 = vunpack.c.h.b16 %v1457
        %v1551 = vunpack.c.l.b16 %v1458
        %v1552 = vunpack.c.h.b16 %v1458
        %v1553 = vunpack.c.l.b16 %v1459
        %v1554 = vunpack.c.h.b16 %v1459
        %v1555 = vunpack.c.l.b16 %v1460
        %v1556 = vunpack.c.h.b16 %v1460
        %v1557 = vpack.c.b16 %v1495, %v1493
        %v1558 = vpack.c.b16 %v1496, %v1494
        %v1559 = vpack.c.b16 %v1499, %v1497
        %v1560 = vpack.c.b16 %v1500, %v1498
        %v1561 = vpack.c.b16 %v1503, %v1501
        %v1562 = vpack.c.b16 %v1504, %v1502
        %v1563 = vpack.c.b16 %v1507, %v1505
        %v1564 = vpack.c.b16 %v1508, %v1506
        %v1565 = vpack.c.b16 %v1511, %v1509
        %v1566 = vpack.c.b16 %v1512, %v1510
        %v1567 = vpack.c.b16 %v1515, %v1513
        %v1568 = vpack.c.b16 %v1516, %v1514
        %v1569 = vpack.c.b16 %v1519, %v1517
        %v1570 = vpack.c.b16 %v1520, %v1518
        %v1571 = vpack.c.b16 %v1523, %v1521
        %v1572 = vpack.c.b16 %v1524, %v1522
        %v1573 = vpack.c.b16 %v1527, %v1525
        %v1574 = vpack.c.b16 %v1528, %v1526
        %v1575 = vpack.c.b16 %v1531, %v1529
        %v1576 = vpack.c.b16 %v1532, %v1530
        %v1577 = vpack.c.b16 %v1535, %v1533
        %v1578 = vpack.c.b16 %v1536, %v1534
        %v1579 = vpack.c.b16 %v1539, %v1537
        %v1580 = vpack.c.b16 %v1540, %v1538
        %v1581 = vpack.c.b16 %v1543, %v1541
        %v1582 = vpack.c.b16 %v1544, %v1542
        %v1583 = vpack.c.b16 %v1547, %v1545
        %v1584 = vpack.c.b16 %v1548, %v1546
        %v1585 = vpack.c.b16 %v1551, %v1549
        %v1586 = vpack.c.b16 %v1552, %v1550
        %v1587 = vpack.c.b16 %v1555, %v1553
        %v1588 = vpack.c.b16 %v1556, %v1554
        %1621 = vmatprep.subr.bf16.mxu0 %v1558
        %1622 = vmatpush1.bf16.msra.mxu0 %v1557
        %1623 = vmatprep.subr.bf16.mxu0 %v1560
        %1624 = vmatpush1.bf16.msra.mxu0 %v1559
        %1625 = vmatprep.subr.bf16.mxu0 %v1562
        %1626 = vmatpush1.bf16.msra.mxu0 %v1561
        %1627 = vmatprep.subr.bf16.mxu0 %v1564
        %1628 = vmatpush1.bf16.msra.mxu0 %v1563
        %1629 = vmatprep.subr.bf16.mxu0 %v1566
        %1630 = vmatpush1.bf16.msra.mxu0 %v1565
        %1631 = vmatprep.subr.bf16.mxu0 %v1568
        %1632 = vmatpush1.bf16.msra.mxu0 %v1567
        %1633 = vmatprep.subr.bf16.mxu0 %v1570
        %1634 = vmatpush1.bf16.msra.mxu0 %v1569
        %1635 = vmatprep.subr.bf16.mxu0 %v1572
        %1636 = vmatpush1.bf16.msra.mxu0 %v1571
        %1637 = vmatprep.subr.bf16.mxu0 %v1574
        %1638 = vmatpush1.bf16.msra.mxu0 %v1573
        %1639 = vmatprep.subr.bf16.mxu0 %v1576
        %1640 = vmatpush1.bf16.msra.mxu0 %v1575
        %1641 = vmatprep.subr.bf16.mxu0 %v1578
        %1642 = vmatpush1.bf16.msra.mxu0 %v1577
        %1643 = vmatprep.subr.bf16.mxu0 %v1580
        %1644 = vmatpush1.bf16.msra.mxu0 %v1579
        %1645 = vmatprep.subr.bf16.mxu0 %v1582
        %1646 = vmatpush1.bf16.msra.mxu0 %v1581
        %1647 = vmatprep.subr.bf16.mxu0 %v1584
        %1648 = vmatpush1.bf16.msra.mxu0 %v1583
        %1649 = vmatprep.subr.bf16.mxu0 %v1586
        %1650 = vmatpush1.bf16.msra.mxu0 %v1585
        %1651 = vmatprep.subr.bf16.mxu0 %v1588
        %1652 = vmatpush1.bf16.msra.mxu0 %v1587
        %1653 = vmatprep.mubr.bf16.mxu0 %v1428
        %1654 = vmatmul.mubr.bf16.gmra.mrb[0].mxu0 %v1427
        %v1655 = vpop.f32.mrb[0].mxu0
        %v1656 = vadd.f32 0.0, %v1655
        %v1657 = vpop.f32.mrb[0].mxu0
        %v1658 = vadd.f32 0.0, %v1657
        %v1659 = vpop.f32.mrb[0].mxu0
        %v1660 = vadd.f32 0.0, %v1659
        %v1661 = vpop.f32.mrb[0].mxu0
        %v1662 = vadd.f32 0.0, %v1661
        %1663 = vdwg.mxu0
        %v1664 = vadd.f32 %v1340, %v1656
        %v1665 = vadd.f32 %v1341, %v1658
        %v1666 = vadd.f32 %v1342, %v1660
        %v1667 = vadd.f32 %v1343, %v1662
        %v1668 = vmax.f32 %v1664, %v1666
        %v1669 = vrot.slane %v1668, 4
        %v1670 = vmax.f32 %v1668, %v1669
        %v1671 = vrot.slane %v1670, 2
        %v1672 = vmax.f32 %v1670, %v1671
        %v1673 = vrot.slane %v1672, 1
        %v1674 = vmax.f32 %v1672, %v1673
        %v1675 = vmax.f32 %v1665, %v1667
        %v1676 = vrot.slane %v1675, 4
        %v1677 = vmax.f32 %v1675, %v1676
        %v1678 = vrot.slane %v1677, 2
        %v1679 = vmax.f32 %v1677, %v1678
        %v1680 = vrot.slane %v1679, 1
        %v1681 = vmax.f32 %v1679, %v1680
        %v1682 = vld [vmem:[#allocation2] sm:$0x3]
        %v1685 = vcombine.low %v1674, %v1681
        %v1687 = vunpack.c.l.s4 1966171168
        %v1688 = vunpack.c.0.s8 %v1687
        %v1689 = vlaneseq
        %v1690 = vshrl.u32 %v1689, 7
        %v1691 = vsub.s32 %v1688, %v1690
        %v1692 = vrot.slane %v1685, %v1691
        %v1694 = vunpack.c.l.s4 1966171168
        %v1695 = vunpack.c.0.s8 %v1694
        %v1696 = vlaneseq
        %v1697 = vshrl.u32 %v1696, 7
        %v1698 = vsub.s32 %v1695, %v1697
        %v1699 = vrot.slane %v1692, %v1698
        %v1701 = vmax.f32 %v1682, %v1699
        %v1702 = vlaneseq
        %vm1703 = vcmp.ge.s32.totalorder %v1702, 0
        %vm1704 = vcmp.lt.s32.totalorder %v1702, 256
        %vm1705 = vmand %vm1703, %vm1704
        %1706 = vst.msk [vmem:[#allocation2] sm:$0x3] %vm1705, %v1701
        // Predicated region
        $region57: #{rot_red_forward.1} parent=51 // pred_check
          %p1707 = pneg %p327
        $region58: #{rot_red_forward.1} parent=51 // pred_check_branch
          %1709 = sbr.rel (%p1707) target = $region60
        $region59: #{rot_red_forward.1} parent=51 // pred_region
          %v1710 = vld [vmem:[#allocation2] sm:$0x3]
          %v1711 = vld [vmem:[%s3] sm:$0x3]
          %v1712 = vadd.f32 %v1710, %v1711
          %v1713 = vmax.f32 %v1712, 0.0
          %v1714 = vld [vmem:[%s4] sm:$0xff]
          %v1715 = vld [vmem:[%s4 + $0x8] sm:$0xff]
          %v1716 = vld [vmem:[%s4 + $0x10] sm:$0xff]
          %v1717 = vld [vmem:[%s4 + $0x18] sm:$0xff]
          %v1718 = vld [vmem:[%s4 + $0x20] sm:$0xff]
          %v1719 = vld [vmem:[%s4 + $0x28] sm:$0xff]
          %v1720 = vld [vmem:[%s4 + $0x30] sm:$0xff]
          %v1721 = vld [vmem:[%s4 + $0x38] sm:$0xff]
          %v1722 = vld [vmem:[%s4 + $0x40] sm:$0xff]
          %v1723 = vld [vmem:[%s4 + $0x48] sm:$0xff]
          %v1724 = vld [vmem:[%s4 + $0x50] sm:$0xff]
          %v1725 = vld [vmem:[%s4 + $0x58] sm:$0xff]
          %v1726 = vld [vmem:[%s4 + $0x60] sm:$0xff]
          %v1727 = vld [vmem:[%s4 + $0x68] sm:$0xff]
          %v1728 = vld [vmem:[%s4 + $0x70] sm:$0xff]
          %v1729 = vld [vmem:[%s4 + $0x78] sm:$0xff]
          %v1730 = vld [vmem:[%s4 + $0x80] sm:$0xff]
          %v1731 = vld [vmem:[%s4 + $0x88] sm:$0xff]
          %v1732 = vld [vmem:[%s4 + $0x90] sm:$0xff]
          %v1733 = vld [vmem:[%s4 + $0x98] sm:$0xff]
          %v1734 = vld [vmem:[%s4 + $0xa0] sm:$0xff]
          %v1735 = vld [vmem:[%s4 + $0xa8] sm:$0xff]
          %v1736 = vld [vmem:[%s4 + $0xb0] sm:$0xff]
          %v1737 = vld [vmem:[%s4 + $0xb8] sm:$0xff]
          %v1738 = vld [vmem:[%s4 + $0xc0] sm:$0xff]
          %v1739 = vld [vmem:[%s4 + $0xc8] sm:$0xff]
          %v1740 = vld [vmem:[%s4 + $0xd0] sm:$0xff]
          %v1741 = vld [vmem:[%s4 + $0xd8] sm:$0xff]
          %v1742 = vld [vmem:[%s4 + $0xe0] sm:$0xff]
          %v1743 = vld [vmem:[%s4 + $0xe8] sm:$0xff]
          %v1744 = vld [vmem:[%s4 + $0xf0] sm:$0xff]
          %v1745 = vld [vmem:[%s4 + $0xf8] sm:$0xff]
          %v1746 = vld [vmem:[%s4 + $0x100] sm:$0xff]
          %v1747 = vld [vmem:[%s4 + $0x108] sm:$0xff]
          %v1748 = vld [vmem:[%s4 + $0x110] sm:$0xff]
          %v1749 = vld [vmem:[%s4 + $0x118] sm:$0xff]
          %v1750 = vld [vmem:[%s4 + $0x120] sm:$0xff]
          %v1751 = vld [vmem:[%s4 + $0x128] sm:$0xff]
          %v1752 = vld [vmem:[%s4 + $0x130] sm:$0xff]
          %v1753 = vld [vmem:[%s4 + $0x138] sm:$0xff]
          %v1754 = vld [vmem:[%s4 + $0x140] sm:$0xff]
          %v1755 = vld [vmem:[%s4 + $0x148] sm:$0xff]
          %v1756 = vld [vmem:[%s4 + $0x150] sm:$0xff]
          %v1757 = vld [vmem:[%s4 + $0x158] sm:$0xff]
          %v1758 = vld [vmem:[%s4 + $0x160] sm:$0xff]
          %v1759 = vld [vmem:[%s4 + $0x168] sm:$0xff]
          %v1760 = vld [vmem:[%s4 + $0x170] sm:$0xff]
          %v1761 = vld [vmem:[%s4 + $0x178] sm:$0xff]
          %v1762 = vld [vmem:[%s4 + $0x180] sm:$0xff]
          %v1763 = vld [vmem:[%s4 + $0x188] sm:$0xff]
          %v1764 = vld [vmem:[%s4 + $0x190] sm:$0xff]
          %v1765 = vld [vmem:[%s4 + $0x198] sm:$0xff]
          %v1766 = vld [vmem:[%s4 + $0x1a0] sm:$0xff]
          %v1767 = vld [vmem:[%s4 + $0x1a8] sm:$0xff]
          %v1768 = vld [vmem:[%s4 + $0x1b0] sm:$0xff]
          %v1769 = vld [vmem:[%s4 + $0x1b8] sm:$0xff]
          %v1770 = vld [vmem:[%s4 + $0x1c0] sm:$0xff]
          %v1771 = vld [vmem:[%s4 + $0x1c8] sm:$0xff]
          %v1772 = vld [vmem:[%s4 + $0x1d0] sm:$0xff]
          %v1773 = vld [vmem:[%s4 + $0x1d8] sm:$0xff]
          %v1774 = vld [vmem:[%s4 + $0x1e0] sm:$0xff]
          %v1775 = vld [vmem:[%s4 + $0x1e8] sm:$0xff]
          %v1776 = vld [vmem:[%s4 + $0x1f0] sm:$0xff]
          %v1777 = vld [vmem:[%s4 + $0x1f8] sm:$0xff]
          %v1778 = vld [vmem:[%s5] sm:$0x3]
          %v1780 = vlaneseq
          %v1781 = vshrl.u32 %v1780, 7
          %v1782 = vsub.s32 0, %v1781
          %v1783 = vrot.slane %v1713, %v1782
          %v1784 = vlaneseq
          %v1785 = vshrl.u32 %v1784, 7
          %v1786 = vsub.s32 1, %v1785
          %v1787 = vrot.slane %v1713, %v1786
          %v1791 = vlaneseq
          %v1792 = vshrl.u32 %v1791, 7
          %v1793 = vsub.s32 0, %v1792
          %v1794 = vrot.slane %v1778, %v1793
          %v1795 = vlaneseq
          %v1796 = vshrl.u32 %v1795, 7
          %v1797 = vsub.s32 1, %v1796
          %v1798 = vrot.slane %v1778, %v1797
          %1801 = vmatprep.subr.mxu0 %v1715
          %1802 = vmatpush1.msra.mxu0 %v1714
          %1803 = vmatprep.subr.mxu0 %v1717
          %1804 = vmatpush1.msra.mxu0 %v1716
          %1805 = vmatprep.subr.mxu0 %v1719
          %1806 = vmatpush1.msra.mxu0 %v1718
          %1807 = vmatprep.subr.mxu0 %v1721
          %1808 = vmatpush1.msra.mxu0 %v1720
          %1809 = vmatprep.subr.mxu0 %v1723
          %1810 = vmatpush1.msra.mxu0 %v1722
          %1811 = vmatprep.subr.mxu0 %v1725
          %1812 = vmatpush1.msra.mxu0 %v1724
          %1813 = vmatprep.subr.mxu0 %v1727
          %1814 = vmatpush1.msra.mxu0 %v1726
          %1815 = vmatprep.subr.mxu0 %v1729
          %1816 = vmatpush1.msra.mxu0 %v1728
          %1817 = vmatprep.subr.mxu0 %v1731
          %1818 = vmatpush1.msra.mxu0 %v1730
          %1819 = vmatprep.subr.mxu0 %v1733
          %1820 = vmatpush1.msra.mxu0 %v1732
          %1821 = vmatprep.subr.mxu0 %v1735
          %1822 = vmatpush1.msra.mxu0 %v1734
          %1823 = vmatprep.subr.mxu0 %v1737
          %1824 = vmatpush1.msra.mxu0 %v1736
          %1825 = vmatprep.subr.mxu0 %v1739
          %1826 = vmatpush1.msra.mxu0 %v1738
          %1827 = vmatprep.subr.mxu0 %v1741
          %1828 = vmatpush1.msra.mxu0 %v1740
          %1829 = vmatprep.subr.mxu0 %v1743
          %1830 = vmatpush1.msra.mxu0 %v1742
          %1831 = vmatprep.subr.mxu0 %v1745
          %1832 = vmatpush1.msra.mxu0 %v1744
          %1833 = vmatprep.subr.mxu0 %v1747
          %1834 = vmatpush1.msra.mxu0 %v1746
          %1835 = vmatprep.subr.mxu0 %v1749
          %1836 = vmatpush1.msra.mxu0 %v1748
          %1837 = vmatprep.subr.mxu0 %v1751
          %1838 = vmatpush1.msra.mxu0 %v1750
          %1839 = vmatprep.subr.mxu0 %v1753
          %1840 = vmatpush1.msra.mxu0 %v1752
          %1841 = vmatprep.subr.mxu0 %v1755
          %1842 = vmatpush1.msra.mxu0 %v1754
          %1843 = vmatprep.subr.mxu0 %v1757
          %1844 = vmatpush1.msra.mxu0 %v1756
          %1845 = vmatprep.subr.mxu0 %v1759
          %1846 = vmatpush1.msra.mxu0 %v1758
          %1847 = vmatprep.subr.mxu0 %v1761
          %1848 = vmatpush1.msra.mxu0 %v1760
          %1849 = vmatprep.subr.mxu0 %v1763
          %1850 = vmatpush1.msra.mxu0 %v1762
          %1851 = vmatprep.subr.mxu0 %v1765
          %1852 = vmatpush1.msra.mxu0 %v1764
          %1853 = vmatprep.subr.mxu0 %v1767
          %1854 = vmatpush1.msra.mxu0 %v1766
          %1855 = vmatprep.subr.mxu0 %v1769
          %1856 = vmatpush1.msra.mxu0 %v1768
          %1857 = vmatprep.subr.mxu0 %v1771
          %1858 = vmatpush1.msra.mxu0 %v1770
          %1859 = vmatprep.subr.mxu0 %v1773
          %1860 = vmatpush1.msra.mxu0 %v1772
          %1861 = vmatprep.subr.mxu0 %v1775
          %1862 = vmatpush1.msra.mxu0 %v1774
          %1863 = vmatprep.subr.mxu0 %v1777
          %1864 = vmatpush1.msra.mxu0 %v1776
          %1865 = vmatprep.mubr.f32.mxu0 %v1787
          %1866 = vmatmul.mubr.f32.gmra.mrb[0].mxu0 %v1783
          %v1867 = vpop.f32.mrb[0].mxu0
          %v1868 = vadd.f32 %v1794, %v1867
          %v1869 = vpop.f32.mrb[0].mxu0
          %v1870 = vadd.f32 %v1798, %v1869
          %1871 = vdwg.mxu0
          %v1872 = vmax.f32 %v1868, 0.0
          %v1873 = vmax.f32 %v1870, 0.0
          %v1874 = vld [vmem:[%s6] sm:$0xff]
          %v1875 = vld [vmem:[%s6 + $0x8] sm:$0xff]
          %v1876 = vld [vmem:[%s6 + $0x10] sm:$0xff]
          %v1877 = vld [vmem:[%s6 + $0x18] sm:$0xff]
          %v1878 = vld [vmem:[%s6 + $0x20] sm:$0xff]
          %v1879 = vld [vmem:[%s6 + $0x28] sm:$0xff]
          %v1880 = vld [vmem:[%s6 + $0x30] sm:$0xff]
          %v1881 = vld [vmem:[%s6 + $0x38] sm:$0xff]
          %v1882 = vld [vmem:[%s6 + $0x40] sm:$0xff]
          %v1883 = vld [vmem:[%s6 + $0x48] sm:$0xff]
          %v1884 = vld [vmem:[%s6 + $0x50] sm:$0xff]
          %v1885 = vld [vmem:[%s6 + $0x58] sm:$0xff]
          %v1886 = vld [vmem:[%s6 + $0x60] sm:$0xff]
          %v1887 = vld [vmem:[%s6 + $0x68] sm:$0xff]
          %v1888 = vld [vmem:[%s6 + $0x70] sm:$0xff]
          %v1889 = vld [vmem:[%s6 + $0x78] sm:$0xff]
          %v1890 = vld [vmem:[%s6 + $0x80] sm:$0xff]
          %v1891 = vld [vmem:[%s6 + $0x88] sm:$0xff]
          %v1892 = vld [vmem:[%s6 + $0x90] sm:$0xff]
          %v1893 = vld [vmem:[%s6 + $0x98] sm:$0xff]
          %v1894 = vld [vmem:[%s6 + $0xa0] sm:$0xff]
          %v1895 = vld [vmem:[%s6 + $0xa8] sm:$0xff]
          %v1896 = vld [vmem:[%s6 + $0xb0] sm:$0xff]
          %v1897 = vld [vmem:[%s6 + $0xb8] sm:$0xff]
          %v1898 = vld [vmem:[%s6 + $0xc0] sm:$0xff]
          %v1899 = vld [vmem:[%s6 + $0xc8] sm:$0xff]
          %v1900 = vld [vmem:[%s6 + $0xd0] sm:$0xff]
          %v1901 = vld [vmem:[%s6 + $0xd8] sm:$0xff]
          %v1902 = vld [vmem:[%s6 + $0xe0] sm:$0xff]
          %v1903 = vld [vmem:[%s6 + $0xe8] sm:$0xff]
          %v1904 = vld [vmem:[%s6 + $0xf0] sm:$0xff]
          %v1905 = vld [vmem:[%s6 + $0xf8] sm:$0xff]
          %v1906 = vld [vmem:[%s7] sm:$0x1]
          %1907 = vmatprep.subr.mxu0 0.0
          %1908 = vmatpush1.msra.mxu0 %v1874
          %1909 = vmatprep.subr.mxu0 0.0
          %1910 = vmatpush1.msra.mxu0 %v1875
          %1911 = vmatprep.subr.mxu0 0.0
          %1912 = vmatpush1.msra.mxu0 %v1876
          %1913 = vmatprep.subr.mxu0 0.0
          %1914 = vmatpush1.msra.mxu0 %v1877
          %1915 = vmatprep.subr.mxu0 0.0
          %1916 = vmatpush1.msra.mxu0 %v1878
          %1917 = vmatprep.subr.mxu0 0.0
          %1918 = vmatpush1.msra.mxu0 %v1879
          %1919 = vmatprep.subr.mxu0 0.0
          %1920 = vmatpush1.msra.mxu0 %v1880
          %1921 = vmatprep.subr.mxu0 0.0
          %1922 = vmatpush1.msra.mxu0 %v1881
          %1923 = vmatprep.subr.mxu0 0.0
          %1924 = vmatpush1.msra.mxu0 %v1882
          %1925 = vmatprep.subr.mxu0 0.0
          %1926 = vmatpush1.msra.mxu0 %v1883
          %1927 = vmatprep.subr.mxu0 0.0
          %1928 = vmatpush1.msra.mxu0 %v1884
          %1929 = vmatprep.subr.mxu0 0.0
          %1930 = vmatpush1.msra.mxu0 %v1885
          %1931 = vmatprep.subr.mxu0 0.0
          %1932 = vmatpush1.msra.mxu0 %v1886
          %1933 = vmatprep.subr.mxu0 0.0
          %1934 = vmatpush1.msra.mxu0 %v1887
          %1935 = vmatprep.subr.mxu0 0.0
          %1936 = vmatpush1.msra.mxu0 %v1888
          %1937 = vmatprep.subr.mxu0 0.0
          %1938 = vmatpush1.msra.mxu0 %v1889
          %1939 = vmatprep.subr.mxu0 0.0
          %1940 = vmatpush1.msra.mxu0 %v1890
          %1941 = vmatprep.subr.mxu0 0.0
          %1942 = vmatpush1.msra.mxu0 %v1891
          %1943 = vmatprep.subr.mxu0 0.0
          %1944 = vmatpush1.msra.mxu0 %v1892
          %1945 = vmatprep.subr.mxu0 0.0
          %1946 = vmatpush1.msra.mxu0 %v1893
          %1947 = vmatprep.subr.mxu0 0.0
          %1948 = vmatpush1.msra.mxu0 %v1894
          %1949 = vmatprep.subr.mxu0 0.0
          %1950 = vmatpush1.msra.mxu0 %v1895
          %1951 = vmatprep.subr.mxu0 0.0
          %1952 = vmatpush1.msra.mxu0 %v1896
          %1953 = vmatprep.subr.mxu0 0.0
          %1954 = vmatpush1.msra.mxu0 %v1897
          %1955 = vmatprep.subr.mxu0 0.0
          %1956 = vmatpush1.msra.mxu0 %v1898
          %1957 = vmatprep.subr.mxu0 0.0
          %1958 = vmatpush1.msra.mxu0 %v1899
          %1959 = vmatprep.subr.mxu0 0.0
          %1960 = vmatpush1.msra.mxu0 %v1900
          %1961 = vmatprep.subr.mxu0 0.0
          %1962 = vmatpush1.msra.mxu0 %v1901
          %1963 = vmatprep.subr.mxu0 0.0
          %1964 = vmatpush1.msra.mxu0 %v1902
          %1965 = vmatprep.subr.mxu0 0.0
          %1966 = vmatpush1.msra.mxu0 %v1903
          %1967 = vmatprep.subr.mxu0 0.0
          %1968 = vmatpush1.msra.mxu0 %v1904
          %1969 = vmatprep.subr.mxu0 0.0
          %1970 = vmatpush1.msra.mxu0 %v1905
          %1971 = vmatprep.mubr.f32.mxu0 %v1873
          %1972 = vmatmul.mubr.f32.gmra.mrb[0].mxu0 %v1872
          %v1973 = vpop.f32.mrb[0].mxu0
          %v1974 = vadd.f32 %v1906, %v1973
          %v1975 = vpop.f32.mrb[0].mxu0
          %1976 = vdwg.mxu0
          %1977 = vst [vmem:[%s317] sm:$0x1] %v1974
        $region60: #{rot_red_forward.1} parent=51 // pred_fallthru
          _
        %s1978 = sand.u32 %s217, 1
        %s1979 = scalar_lea.sflag [#allocation4], %s1978
        %s1980 = sand.u32 %s217, 1
        %s1981 = scalar_lea.vmem [#allocation3], %s1980
        // Predicated region
        $region61: #{rot_red_forward.1} parent=51 // pred_check
          %p1982 = pneg %p227
        $region62: #{rot_red_forward.1} parent=51 // pred_check_branch
          %1984 = sbr.rel (%p1982) target = $region64
        $region63: #{rot_red_forward.1} parent=51 // pred_region
          %s1986 = ssub.s32 16, 16
          %1987 = vsyncadd %s1979, %s1986
          %s1988 = smul.addr %s26, 16
          %s1989 = scalar_lea.hbm %s8, %s1988
          %s1991 = sshll.u32 %s1981, 4
          %s1992 = int_to_ptr.vmem [resolvable:$true] %s1991
          %1994 = dma.vmem_to_hbm [thread:$0]  %s1992, 16, %s1989, %s1979
        $region64: #{rot_red_forward.1} parent=51 // pred_fallthru
          _
      $region52: #{rot_red_forward.1} parent=5 // pred_fallthru
        _
      %p1995 = scmp.le.s32.totalorder 2, %s17
      // Predicated region
      $region65: #{rot_red_forward.1} parent=5 // pred_check
        %p1996 = pneg %p1995
      $region66: #{rot_red_forward.1} parent=5 // pred_check_branch
        %1998 = sbr.rel (%p1996) target = $region68
      $region67: #{rot_red_forward.1} parent=5 // pred_region
        %s1999 = ssub.s32 %s17, 2
        // Predicated region
        $region69: #{rot_red_forward.1} parent=67 // pred_check
          %p2000 = pneg %p233
        $region70: #{rot_red_forward.1} parent=67 // pred_check_branch
          %2002 = sbr.rel (%p2000) target = $region72
        $region71: #{rot_red_forward.1} parent=67 // pred_region
          %s2003 = sand.u32 %s218, 1
          %s2004 = scalar_lea.sflag [#allocation4], %s2003
          %s2005 = sand.u32 %s218, 1
          %s2006 = scalar_lea.vmem [#allocation3], %s2005
          %2007 = dma.done %s2004, 16
        $region72: #{rot_red_forward.1} parent=67 // pred_fallthru
          _
      $region68: #{rot_red_forward.1} parent=5 // pred_fallthru
        _
    $region6: #{rot_red_forward.1} parent=1 // loop_footer
      %s21 = sadd.s32 1, %s17
    $region7: #{rot_red_forward.1} parent=1 // loop_footer_branch
      %16 = sbr.rel target = $region3
    $region8: #{rot_red_forward.1} parent=1 // loop_exit
      _
    %2008 = vsyncpa [#allocation4], 1
    %s2009 = scalar_lea.sflag [#allocation4], 1
    %2010 = vsyncpa %s2009, 1

</llo_original>
